<compile_context>
chip_gen: v5e
topology: v5e:2x2
jax: 0.10.0
libtpu: 0.0.40
codegen_flags: <defaults>
</compile_context>

<pallas_src>
import math
from functools import partial

import jax
import jax.numpy as jnp
from jax.experimental import pallas as pl
from jax.experimental.pallas import tpu as pltpu

EPS = 1e-5


def _round_up(x: int, m: int) -> int:
    return (x + m - 1) // m * m


def _vmem_budget_bytes() -> int:
    """Generation-aware VMEM budget (per perf review)."""
    phys = None
    try:
        info = pltpu.get_tpu_info()
        phys = getattr(info, "vmem_capacity_bytes", None)
    except Exception:
        phys = None
    if phys is None:
        phys = 64 << 20                     # conservative: assume v7x
    if phys >= (96 << 20):                  # v5e / v6e: 128 MiB physical
        return 104 << 20
    return 48 << 20                         # v7x: 64 MiB physical


# ------------------------------ fused kernel ------------------------------- #

def fused_mlp_kernel(
    x_ref, w1_ref, wh_ref, gamma_ref, beta_ref, wo_ref, bo_ref,    # inputs
    o_ref,                                                         # output (row tile)
    act_ref, sum_ref, sq_ref, scale_ref, shift_ref,                # scratch
    *, n_rows, tm, h_pad, n_hidden, out_act, has_pad,
):
    s = pl.program_id(0)            # stage: 0..n_hidden-1 hidden, n_hidden = output layer
    i = pl.program_id(1)            # row tile
    n_tiles = pl.num_programs(1)
    row0 = pl.multiple_of(i * tm, tm)
    inv_n = 1.0 / n_rows

    def accumulate_stats(y):
        @pl.when(i == 0)
        def _():
            sum_ref[...] = jnp.zeros_like(sum_ref)
            sq_ref[...] = jnp.zeros_like(sq_ref)

        if has_pad:
            # Padded rows exist only in the last tile; mask only there.
            @pl.when(i == n_tiles - 1)
            def _():
                rid = jax.lax.broadcasted_iota(jnp.int32, (tm, h_pad), 0)
                ym = jnp.where((row0 + rid) < n_rows, y, 0.0)
                sum_ref[...] += jnp.sum(ym, axis=0, keepdims=True)
                sq_ref[...] += jnp.sum(ym * ym, axis=0, keepdims=True)

            @pl.when(i != n_tiles - 1)
            def _():
                sum_ref[...] += jnp.sum(y, axis=0, keepdims=True)
                sq_ref[...] += jnp.sum(y * y, axis=0, keepdims=True)
        else:
            sum_ref[...] += jnp.sum(y, axis=0, keepdims=True)
            sq_ref[...] += jnp.sum(y * y, axis=0, keepdims=True)

        @pl.when(i == n_tiles - 1)
        def _():
            mean = sum_ref[...] * inv_n
            var = jnp.maximum(sq_ref[...] * inv_n - mean * mean, 0.0)  # biased var (train mode)
            sc = gamma_ref[...] * jax.lax.rsqrt(var + EPS)             # folded BN scale
            scale_ref[...] = sc
            shift_ref[...] = beta_ref[...] - mean * sc                 # folded BN shift

    def bn_relu_input():
        a = act_ref[pl.ds(row0, tm), :].astype(jnp.float32)
        return jnp.maximum(a * scale_ref[...] + shift_ref[...], 0.0)

    # --- stage 0: first hidden layer, consumes the pipelined x tile -----------
    @pl.when(s == 0)
    def _():
        y = jnp.dot(x_ref[...], w1_ref[...], preferred_element_type=jnp.float32)
        act_ref[pl.ds(row0, tm), :] = y.astype(act_ref.dtype)
        accumulate_stats(y)

    # --- stages 1..n_hidden-1: middle hidden layers ----------------------------
    if n_hidden > 1:
        @pl.when(jnp.logical_and(s >= 1, s <= n_hidden - 1))
        def _():
            h = bn_relu_input().astype(wh_ref.dtype)
            y = jnp.dot(h, wh_ref[...], preferred_element_type=jnp.float32)
            act_ref[pl.ds(row0, tm), :] = y.astype(act_ref.dtype)
            accumulate_stats(y)

    # --- stage n_hidden: output Linear (+bias) (+tanh) --------------------------
    @pl.when(s == n_hidden)
    def _():
        h = bn_relu_input().astype(wo_ref.dtype)
        y = jnp.dot(h, wo_ref[...], preferred_element_type=jnp.float32) + bo_ref[...]
        if out_act == "tanh":
            y = jnp.tanh(y)
        o_ref[...] = y.astype(o_ref.dtype)


# ------------------------------ param prep ---------------------------------- #

def init_mlp_params(key, input_shape, output_shape, hidden_dim, num_layers):
    """Deterministic params mimicking PyTorch default inits (f32)."""
    input_dim = math.prod(input_shape)
    output_dim = math.prod(output_shape)
    params = {"hidden": [], "out": None}

    dims_in = [input_dim] + [hidden_dim] * (num_layers - 2)
    for d_in in dims_in:
        key, wk = jax.random.split(key)
        bound = 1.0 / math.sqrt(d_in)
        w = jax.random.uniform(wk, (d_in, hidden_dim), jnp.float32, -bound, bound)
        gamma = jnp.ones((1, hidden_dim), jnp.float32)   # BN weight init = 1
        beta = jnp.zeros((1, hidden_dim), jnp.float32)   # BN bias init = 0
        params["hidden"].append((w, gamma, beta))

    key, wk, bk = jax.random.split(key, 3)
    bound = 1.0 / math.sqrt(hidden_dim)
    w_out = jax.random.uniform(wk, (hidden_dim, output_dim), jnp.float32, -bound, bound)
    b_out = jax.random.uniform(bk, (1, output_dim), jnp.float32, -bound, bound)
    params["out"] = (w_out, b_out)
    return params


def prepare_params(params):
    """One-time padding / bf16 cast of all weights (hoisted out of the forward)."""
    hidden = params["hidden"]
    w_out, b_out = params["out"]
    n_hidden = len(hidden)
    d_in, h_dim = hidden[0][0].shape
    d_out = w_out.shape[1]

    d_in_p = _round_up(d_in, 128)
    h_p = _round_up(h_dim, 128)
    d_out_p = _round_up(d_out, 128)
    bf16, f32 = jnp.bfloat16, jnp.float32

    w1 = jnp.pad(hidden[0][0].astype(bf16), ((0, d_in_p - d_in), (0, h_p - h_dim)))
    if n_hidden > 1:
        wh = jnp.stack([jnp.pad(w.astype(bf16), ((0, h_p - h_dim), (0, h_p - h_dim)))
                        for (w, _, _) in hidden[1:]])
    else:
        wh = jnp.zeros((1, h_p, h_p), bf16)           # dummy, never read at runtime
    gam = jnp.stack([jnp.pad(g.reshape(1, h_dim).astype(f32), ((0, 0), (0, h_p - h_dim)))
                     for (_, g, _) in hidden])        # (n_hidden, 1, h_p)
    bet = jnp.stack([jnp.pad(b.reshape(1, h_dim).astype(f32), ((0, 0), (0, h_p - h_dim)))
                     for (_, _, b) in hidden])        # (n_hidden, 1, h_p)
    wo = jnp.pad(w_out.astype(bf16), ((0, h_p - h_dim), (0, d_out_p - d_out)))
    bo = jnp.pad(b_out.reshape(1, d_out).astype(f32), ((0, 0), (0, d_out_p - d_out)))

    return dict(w1=w1, wh=wh, gamma=gam, beta=bet, wo=wo, bo=bo,
                d_in=d_in, h_dim=h_dim, d_out=d_out, n_hidden=n_hidden,
                d_in_p=d_in_p, h_p=h_p, d_out_p=d_out_p)


# -------------------------------- wrapper ----------------------------------- #

def mlp_forward(x, prepped, output_shape, output_activation="tanh", row_tile=512):
    """x: (b, l, *input_shape) -> (b, l, *output_shape)."""
    if output_activation not in ("tanh", "none"):
        # TODO(synk): 'relu' branch in the reference applies BatchNorm1d(hidden_dim)
        # to an output_dim-wide tensor (only valid when output_dim == hidden_dim);
        # not implemented here.
        raise NotImplementedError(output_activation)

    b, l = x.shape[:2]
    d_in, h_dim, d_out = prepped["d_in"], prepped["h_dim"], prepped["d_out"]
    d_in_p, h_p, d_out_p = prepped["d_in_p"], prepped["h_p"], prepped["d_out_p"]
    n_hidden = prepped["n_hidden"]
    lh = max(n_hidden - 1, 1)

    n = b * l
    assert math.prod(x.shape[2:]) == d_in, (x.shape, d_in)

    # Row tiling: keep M a multiple of 256 for the 256x256 MXU (v6e/v7x) when
    # more than one tile is needed.
    if n <= row_tile:
        tm = _round_up(n, 8)
    else:
        tm = _round_up(row_tile, 256)
    n_p = _round_up(n, tm)
    n_tiles = n_p // tm
    has_pad = (n_p != n)

    f32, bf16 = jnp.float32, jnp.bfloat16

    # Only x is padded per call.
    x2 = x.reshape(n, d_in).astype(bf16)
    xp = jnp.pad(x2, ((0, n_p - n), (0, d_in_p - d_in)))

    # ---- VMEM accounting (generation-aware budget) -------------------------
    wh_bufs = 3 if lh > 1 else 2
    vmem_need = (
        n_p * h_p * 2                      # bf16 activation slab (resident)
        + 2 * tm * d_in_p * 2              # x tiles (double-buffered)
        + 2 * tm * d_out_p * 4             # output tiles (double-buffered)
        + 2 * d_in_p * h_p * 2             # W1
        + wh_bufs * h_p * h_p * 2          # streamed hidden weights
        + 2 * h_p * d_out_p * 2            # W_out
        + 2 * d_out_p * 4                  # bias
        + 4 * 2 * h_p * 4                  # gamma/beta tiles
        + 4 * h_p * 4                      # BN stats scratch
    )
    budget = _vmem_budget_bytes()
    if vmem_need > budget:
        # TODO(synk): two-pass BN with the activation slab spilled to HBM via
        # manual double-buffered make_async_copy for batches whose residency
        # exceeds VMEM; not implemented here.
        raise ValueError(
            f"fused MLP residency {vmem_need/2**20:.1f} MiB exceeds VMEM budget "
            f"{budget/2**20:.1f} MiB; reduce batch or hidden_dim")
    vmem_limit = int(min(max(vmem_need + (4 << 20), 32 << 20), budget))

    grid = (n_hidden + 1, n_tiles)
    kernel = partial(fused_mlp_kernel, n_rows=n, tm=tm, h_pad=h_p,
                     n_hidden=n_hidden, out_act=output_activation, has_pad=has_pad)

    # ---- BlockSpecs ---------------------------------------------------------
    # x: row-tiled at stage 0; pinned to the LAST tile afterwards so no re-fetch
    # happens at the stage boundary.
    x_spec = pl.BlockSpec((tm, d_in_p), lambda s, i: (jnp.where(s == 0, i, n_tiles - 1), 0))
    w1_spec = pl.BlockSpec((d_in_p, h_p), lambda s, i: (0, 0))

    wh_index = lambda s, i: (jnp.clip(s - 1, 0, lh - 1), 0, 0)
    if lh > 1:
        # 3-deep pipeline so the next stage's (h_p,h_p) weight DMA starts earlier.
        try:
            wh_spec = pl.BlockSpec((None, h_p, h_p), wh_index, pipeline_mode=pl.Buffered(3))
        except TypeError:
            wh_spec = pl.BlockSpec((None, h_p, h_p), wh_index)
    else:
        wh_spec = pl.BlockSpec((None, h_p, h_p), wh_index)

    # gamma/beta streamed one row per stage (no in-kernel iota-select).
    gb_index = lambda s, i: (jnp.minimum(s, n_hidden - 1), 0, 0)
    gamma_spec = pl.BlockSpec((None, 1, h_p), gb_index)
    beta_spec = pl.BlockSpec((None, 1, h_p), gb_index)

    wo_spec = pl.BlockSpec((h_p, d_out_p), lambda s, i: (0, 0))
    bo_spec = pl.BlockSpec((1, d_out_p), lambda s, i: (0, 0))

    # Output is row-tiled: only written during the final stage.
    out_spec = pl.BlockSpec((tm, d_out_p), lambda s, i: (jnp.where(s == n_hidden, i, 0), 0))

    # ---- CostEstimate on padded (true MXU) shapes ---------------------------
    flops = 2 * n_p * (d_in_p * h_p + (n_hidden - 1) * h_p * h_p + h_p * d_out_p)
    transcendentals = n_p * d_out_p if output_activation == "tanh" else 0
    bytes_accessed = (
        n_p * d_in_p * 2 + d_in_p * h_p * 2
        + (lh * h_p * h_p * 2 if n_hidden > 1 else 0)
        + h_p * d_out_p * 2
        + n_hidden * 2 * h_p * 4 + d_out_p * 4
        + n_p * d_out_p * 4
    )

    # TODO(synk): on v7x, split the row-tile axis across the 2 TensorCores
    # (core_map + shared-memory BN-stat combine); single-core here.
    out_pad = pl.pallas_call(
        kernel,
        out_shape=jax.ShapeDtypeStruct((n_p, d_out_p), f32),
        grid_spec=pltpu.PrefetchScalarGridSpec(
            num_scalar_prefetch=0,
            grid=grid,
            in_specs=[x_spec, w1_spec, wh_spec, gamma_spec, beta_spec, wo_spec, bo_spec],
            out_specs=out_spec,
            scratch_shapes=[
                pltpu.VMEM((n_p, h_p), bf16),   # whole-batch layer pre-activations (bf16)
                pltpu.VMEM((1, h_p), f32),      # column sum
                pltpu.VMEM((1, h_p), f32),      # column sum of squares
                pltpu.VMEM((1, h_p), f32),      # folded BN scale
                pltpu.VMEM((1, h_p), f32),      # folded BN shift
            ],
        ),
        compiler_params=pltpu.CompilerParams(
            dimension_semantics=("arbitrary", "arbitrary"),  # stage chain + BN reduction are sequential
            vmem_limit_bytes=vmem_limit,
        ),
        cost_estimate=pl.CostEstimate(flops=flops, transcendentals=transcendentals,
                                      bytes_accessed=bytes_accessed),
    )(xp, prepped["w1"], prepped["wh"], prepped["gamma"], prepped["beta"],
      prepped["wo"], prepped["bo"])

    out = out_pad[:n, :d_out]
    return out.reshape((b, l) + tuple(output_shape))


# --------------------------- pure-JAX reference ----------------------------- #

def mlp_reference(x, params, output_shape, output_activation):
    b, l = x.shape[:2]
    h = x.reshape(b * l, -1).astype(jnp.float32)
    for (w, g, bta) in params["hidden"]:
        y = h @ w
        mean = jnp.mean(y, axis=0, keepdims=True)
        var = jnp.mean((y - mean) ** 2, axis=0, keepdims=True)   # biased var (train mode)
        h = jnp.maximum((y - mean) * jax.lax.rsqrt(var + EPS) * g + bta, 0.0)
    w_out, b_out = params["out"]
    y = h @ w_out + b_out
    if output_activation == "tanh":
        y = jnp.tanh(y)
    return y.reshape((b, l) + tuple(output_shape))


# ---------------------------------- main ------------------------------------ #

if __name__ == "__main__":
    key = jax.random.PRNGKey(0)

    configs = [
        # small config: single row tile, 2 hidden blocks, tanh head
        dict(b=2, l=8, input_shape=(4, 4), output_shape=(4,), hidden_dim=32,
             num_layers=3, output_activation="tanh", max_tol=1.0e-1, mean_tol=2.0e-2),
        # multi-tile config: 3 row tiles (last one padded), 3 hidden blocks (streamed
        # hidden weights + deeper prefetch), 'none' head
        dict(b=2, l=520, input_shape=(4, 4), output_shape=(4,), hidden_dim=32,
             num_layers=4, output_activation="none", max_tol=1.5e-1, mean_tol=2.0e-2),
    ]

    for cfg in configs:
        key, xk, pk = jax.random.split(key, 3)
        x = jax.random.normal(xk, (cfg["b"], cfg["l"]) + cfg["input_shape"], jnp.float32)
        params = init_mlp_params(pk, cfg["input_shape"], cfg["output_shape"],
                                 cfg["hidden_dim"], cfg["num_layers"])
        prepped = prepare_params(params)

        out = mlp_forward(x, prepped, cfg["output_shape"], cfg["output_activation"])
        out = jax.block_until_ready(out)

        assert out.shape == (cfg["b"], cfg["l"]) + cfg["output_shape"], out.shape
        assert bool(jnp.all(jnp.isfinite(out)))

        ref = mlp_reference(x, params, cfg["output_shape"], cfg["output_activation"])
        err = jnp.abs(out - ref)
        max_err = float(jnp.max(err))
        mean_err = float(jnp.mean(err))
        assert max_err < cfg["max_tol"], f"max abs err {max_err} too large (cfg={cfg})"
        assert mean_err < cfg["mean_tol"], f"mean abs err {mean_err} too large (cfg={cfg})"

    print("KERNEL_OK")
</pallas_src>

<mosaic_0001>
module attributes {stable_mosaic.version = 11 : i64} {
  func.func @fused_mlp_kernel(%arg0: i32, %arg1: i32, %arg2: memref<16x128xbf16, #tpu.memory_space<vmem>>, %arg3: memref<128x128xbf16, #tpu.memory_space<vmem>>, %arg4: memref<1x128x128xbf16, #tpu.memory_space<vmem>>, %arg5: memref<1x1x128xf32, #tpu.memory_space<vmem>>, %arg6: memref<1x1x128xf32, #tpu.memory_space<vmem>>, %arg7: memref<128x128xbf16, #tpu.memory_space<vmem>>, %arg8: memref<1x128xf32, #tpu.memory_space<vmem>>, %arg9: memref<16x128xf32, #tpu.memory_space<vmem>>, %arg10: memref<16x128xbf16, #tpu.memory_space<vmem>>, %arg11: memref<1x128xf32, #tpu.memory_space<vmem>>, %arg12: memref<1x128xf32, #tpu.memory_space<vmem>>, %arg13: memref<1x128xf32, #tpu.memory_space<vmem>>, %arg14: memref<1x128xf32, #tpu.memory_space<vmem>>) attributes {dimension_semantics = [#tpu.dimension_semantics<arbitrary>, #tpu.dimension_semantics<arbitrary>], iteration_bounds = array<i64: 3, 1>, scalar_prefetch = 0 : i64, scratch_operands = 5 : i64, tpu.core_type = #tpu.core_type<tc>, window_params = [{transform_indices = @transform_0, window_bounds = array<i64: 16, 128>}, {pipeline_mode = #tpu.pipeline_mode<synchronous>, transform_indices = @transform_1, window_bounds = array<i64: 128, 128>}, {transform_indices = @transform_2, window_bounds = array<i64: 1, 128, 128>}, {transform_indices = @transform_3, window_bounds = array<i64: 1, 1, 128>}, {transform_indices = @transform_4, window_bounds = array<i64: 1, 1, 128>}, {pipeline_mode = #tpu.pipeline_mode<synchronous>, transform_indices = @transform_5, window_bounds = array<i64: 128, 128>}, {pipeline_mode = #tpu.pipeline_mode<synchronous>, transform_indices = @transform_6, window_bounds = array<i64: 1, 128>}, {transform_indices = @transform_7, window_bounds = array<i64: 16, 128>}]} {
    %c16_i32 = arith.constant 16 : i32
    %0 = arith.muli %arg1, %c16_i32 : i32
    %1 = tpu.assume_multiple %0, 16 : i32
    %c0_i32 = arith.constant 0 : i32
    %2 = arith.cmpi eq, %arg0, %c0_i32 : i32
    %3 = arith.extui %2 : i1 to i32
    %c0_i32_0 = arith.constant 0 : i32
    %4 = arith.cmpi ne, %3, %c0_i32_0 : i32
    scf.if %4 {
      %c0 = arith.constant 0 : index
      %c0_4 = arith.constant 0 : index
      %13 = vector.load %arg2[%c0, %c0_4] : memref<16x128xbf16, #tpu.memory_space<vmem>>, vector<16x128xbf16>
      %c0_5 = arith.constant 0 : index
      %c0_6 = arith.constant 0 : index
      %14 = vector.load %arg3[%c0_5, %c0_6] : memref<128x128xbf16, #tpu.memory_space<vmem>>, vector<128x128xbf16>
      %cst = arith.constant dense<0.000000e+00> : vector<16x128xf32>
      %15 = tpu.matmul %13, %14, %cst {dimension_numbers = #tpu.dot_dimension_numbers<[1], [0], [0], [1], [0, 0, 1, 1], [], []>} : vector<16x128xbf16>, vector<128x128xbf16>, vector<16x128xf32> -> vector<16x128xf32>
      %16 = arith.truncf %15 : vector<16x128xf32> to vector<16x128xbf16>
      %17 = arith.index_cast %1 : i32 to index
      %c0_7 = arith.constant 0 : index
      %18 = vector.load %arg10[%17, %c0_7] : memref<16x128xbf16, #tpu.memory_space<vmem>>, vector<16x128xbf16>
      tpu.vector_store %arg10[%17, %c0_7], %16 {strides = array<i32>} : memref<16x128xbf16, #tpu.memory_space<vmem>>, vector<16x128xbf16>,
      %c0_i32_8 = arith.constant 0 : i32
      %19 = arith.cmpi eq, %arg1, %c0_i32_8 : i32
      %20 = arith.extui %19 : i1 to i32
      %c0_i32_9 = arith.constant 0 : i32
      %21 = arith.cmpi ne, %20, %c0_i32_9 : i32
      scf.if %21 {
        %cst_22 = arith.constant 0.000000e+00 : f32
        %36 = vector.broadcast %cst_22 : f32 to vector<1x128xf32>
        %c0_23 = arith.constant 0 : index
        %c0_24 = arith.constant 0 : index
        %37 = vector.load %arg11[%c0_23, %c0_24] : memref<1x128xf32, #tpu.memory_space<vmem>>, vector<1x128xf32>
        tpu.vector_store %arg11[%c0_23, %c0_24], %36 {strides = array<i32>} : memref<1x128xf32, #tpu.memory_space<vmem>>, vector<1x128xf32>,
        %cst_25 = arith.constant 0.000000e+00 : f32
        %38 = vector.broadcast %cst_25 : f32 to vector<1x128xf32>
        %c0_26 = arith.constant 0 : index
        %c0_27 = arith.constant 0 : index
        %39 = vector.load %arg12[%c0_26, %c0_27] : memref<1x128xf32, #tpu.memory_space<vmem>>, vector<1x128xf32>
        tpu.vector_store %arg12[%c0_26, %c0_27], %38 {strides = array<i32>} : memref<1x128xf32, #tpu.memory_space<vmem>>, vector<1x128xf32>,
      } else {
      }
      %c0_10 = arith.constant 0 : index
      %c0_11 = arith.constant 0 : index
      %22 = vector.load %arg11[%c0_10, %c0_11] : memref<1x128xf32, #tpu.memory_space<vmem>>, vector<1x128xf32>
      %cst_12 = arith.constant dense<0.000000e+00> : vector<128xf32>
      %23 = vector.multi_reduction <add>, %15, %cst_12 [0] : vector<16x128xf32> to vector<128xf32>
      %24 = vector.shape_cast %23 : vector<128xf32> to vector<1x128xf32>
      %25 = arith.addf %22, %24 : vector<1x128xf32>
      %c0_13 = arith.constant 0 : index
      %c0_14 = arith.constant 0 : index
      %26 = vector.load %arg11[%c0_13, %c0_14] : memref<1x128xf32, #tpu.memory_space<vmem>>, vector<1x128xf32>
      tpu.vector_store %arg11[%c0_13, %c0_14], %25 {strides = array<i32>} : memref<1x128xf32, #tpu.memory_space<vmem>>, vector<1x128xf32>,
      %c0_15 = arith.constant 0 : index
      %c0_16 = arith.constant 0 : index
      %27 = vector.load %arg12[%c0_15, %c0_16] : memref<1x128xf32, #tpu.memory_space<vmem>>, vector<1x128xf32>
      %28 = arith.mulf %15, %15 : vector<16x128xf32>
      %cst_17 = arith.constant dense<0.000000e+00> : vector<128xf32>
      %29 = vector.multi_reduction <add>, %28, %cst_17 [0] : vector<16x128xf32> to vector<128xf32>
      %30 = vector.shape_cast %29 : vector<128xf32> to vector<1x128xf32>
      %31 = arith.addf %27, %30 : vector<1x128xf32>
      %c0_18 = arith.constant 0 : index
      %c0_19 = arith.constant 0 : index
      %32 = vector.load %arg12[%c0_18, %c0_19] : memref<1x128xf32, #tpu.memory_space<vmem>>, vector<1x128xf32>
      tpu.vector_store %arg12[%c0_18, %c0_19], %31 {strides = array<i32>} : memref<1x128xf32, #tpu.memory_space<vmem>>, vector<1x128xf32>,
      %c0_i32_20 = arith.constant 0 : i32
      %33 = arith.cmpi eq, %arg1, %c0_i32_20 : i32
      %34 = arith.extui %33 : i1 to i32
      %c0_i32_21 = arith.constant 0 : i32
      %35 = arith.cmpi ne, %34, %c0_i32_21 : i32
      scf.if %35 {
        %c0_22 = arith.constant 0 : index
        %c0_23 = arith.constant 0 : index
        %36 = vector.load %arg11[%c0_22, %c0_23] : memref<1x128xf32, #tpu.memory_space<vmem>>, vector<1x128xf32>
        %cst_24 = arith.constant 6.250000e-02 : f32
        %37 = vector.broadcast %cst_24 : f32 to vector<1x128xf32>
        %38 = arith.mulf %36, %37 : vector<1x128xf32>
        %c0_25 = arith.constant 0 : index
        %c0_26 = arith.constant 0 : index
        %39 = vector.load %arg12[%c0_25, %c0_26] : memref<1x128xf32, #tpu.memory_space<vmem>>, vector<1x128xf32>
        %cst_27 = arith.constant 6.250000e-02 : f32
        %40 = vector.broadcast %cst_27 : f32 to vector<1x128xf32>
        %41 = arith.mulf %39, %40 : vector<1x128xf32>
        %42 = arith.mulf %38, %38 : vector<1x128xf32>
        %43 = arith.subf %41, %42 : vector<1x128xf32>
        %cst_28 = arith.constant 0.000000e+00 : f32
        %44 = vector.broadcast %cst_28 : f32 to vector<1x128xf32>
        %45 = arith.maximumf %43, %44 : vector<1x128xf32>
        %c0_29 = arith.constant 0 : index
        %c0_30 = arith.constant 0 : index
        %c0_31 = arith.constant 0 : index
        %46 = vector.load %arg5[%c0_29, %c0_30, %c0_31] : memref<1x1x128xf32, #tpu.memory_space<vmem>>, vector<1x1x128xf32>
        %47 = vector.shape_cast %46 : vector<1x1x128xf32> to vector<1x128xf32>
        %cst_32 = arith.constant 9.99999974E-6 : f32
        %48 = vector.broadcast %cst_32 : f32 to vector<1x128xf32>
        %49 = arith.addf %45, %48 : vector<1x128xf32>
        %50 = math.rsqrt %49 : vector<1x128xf32>
        %51 = arith.mulf %47, %50 : vector<1x128xf32>
        %c0_33 = arith.constant 0 : index
        %c0_34 = arith.constant 0 : index
        %52 = vector.load %arg13[%c0_33, %c0_34] : memref<1x128xf32, #tpu.memory_space<vmem>>, vector<1x128xf32>
        tpu.vector_store %arg13[%c0_33, %c0_34], %51 {strides = array<i32>} : memref<1x128xf32, #tpu.memory_space<vmem>>, vector<1x128xf32>,
        %c0_35 = arith.constant 0 : index
        %c0_36 = arith.constant 0 : index
        %c0_37 = arith.constant 0 : index
        %53 = vector.load %arg6[%c0_35, %c0_36, %c0_37] : memref<1x1x128xf32, #tpu.memory_space<vmem>>, vector<1x1x128xf32>
        %54 = vector.shape_cast %53 : vector<1x1x128xf32> to vector<1x128xf32>
        %55 = arith.mulf %38, %51 : vector<1x128xf32>
        %56 = arith.subf %54, %55 : vector<1x128xf32>
        %c0_38 = arith.constant 0 : index
        %c0_39 = arith.constant 0 : index
        %57 = vector.load %arg14[%c0_38, %c0_39] : memref<1x128xf32, #tpu.memory_space<vmem>>, vector<1x128xf32>
        tpu.vector_store %arg14[%c0_38, %c0_39], %56 {strides = array<i32>} : memref<1x128xf32, #tpu.memory_space<vmem>>, vector<1x128xf32>,
      } else {
      }
    } else {
    }
    %c1_i32 = arith.constant 1 : i32
    %5 = arith.cmpi sge, %arg0, %c1_i32 : i32
    %c1_i32_1 = arith.constant 1 : i32
    %6 = arith.cmpi sle, %arg0, %c1_i32_1 : i32
    %7 = arith.andi %5, %6 : i1
    %8 = arith.extui %7 : i1 to i32
    %c0_i32_2 = arith.constant 0 : i32
    %9 = arith.cmpi ne, %8, %c0_i32_2 : i32
    scf.if %9 {
      %13 = arith.index_cast %1 : i32 to index
      %c0 = arith.constant 0 : index
      %14 = vector.load %arg10[%13, %c0] : memref<16x128xbf16, #tpu.memory_space<vmem>>, vector<16x128xbf16>
      %15 = arith.extf %14 : vector<16x128xbf16> to vector<16x128xf32>
      %c0_4 = arith.constant 0 : index
      %c0_5 = arith.constant 0 : index
      %16 = vector.load %arg13[%c0_4, %c0_5] : memref<1x128xf32, #tpu.memory_space<vmem>>, vector<1x128xf32>
      %17 = vector.broadcast %16 : vector<1x128xf32> to vector<16x128xf32>
      %18 = arith.mulf %15, %17 : vector<16x128xf32>
      %c0_6 = arith.constant 0 : index
      %c0_7 = arith.constant 0 : index
      %19 = vector.load %arg14[%c0_6, %c0_7] : memref<1x128xf32, #tpu.memory_space<vmem>>, vector<1x128xf32>
      %20 = vector.broadcast %19 : vector<1x128xf32> to vector<16x128xf32>
      %21 = arith.addf %18, %20 : vector<16x128xf32>
      %cst = arith.constant 0.000000e+00 : f32
      %22 = vector.broadcast %cst : f32 to vector<16x128xf32>
      %23 = arith.maximumf %21, %22 : vector<16x128xf32>
      %24 = arith.truncf %23 : vector<16x128xf32> to vector<16x128xbf16>
      %c0_8 = arith.constant 0 : index
      %c0_9 = arith.constant 0 : index
      %c0_10 = arith.constant 0 : index
      %25 = vector.load %arg4[%c0_8, %c0_9, %c0_10] : memref<1x128x128xbf16, #tpu.memory_space<vmem>>, vector<1x128x128xbf16>
      %26 = vector.shape_cast %25 : vector<1x128x128xbf16> to vector<128x128xbf16>
      %cst_11 = arith.constant dense<0.000000e+00> : vector<16x128xf32>
      %27 = tpu.matmul %24, %26, %cst_11 {dimension_numbers = #tpu.dot_dimension_numbers<[1], [0], [0], [1], [0, 0, 1, 1], [], []>} : vector<16x128xbf16>, vector<128x128xbf16>, vector<16x128xf32> -> vector<16x128xf32>
      %28 = arith.truncf %27 : vector<16x128xf32> to vector<16x128xbf16>
      %29 = arith.index_cast %1 : i32 to index
      %c0_12 = arith.constant 0 : index
      %30 = vector.load %arg10[%29, %c0_12] : memref<16x128xbf16, #tpu.memory_space<vmem>>, vector<16x128xbf16>
      tpu.vector_store %arg10[%29, %c0_12], %28 {strides = array<i32>} : memref<16x128xbf16, #tpu.memory_space<vmem>>, vector<16x128xbf16>,
      %c0_i32_13 = arith.constant 0 : i32
      %31 = arith.cmpi eq, %arg1, %c0_i32_13 : i32
      %32 = arith.extui %31 : i1 to i32
      %c0_i32_14 = arith.constant 0 : i32
      %33 = arith.cmpi ne, %32, %c0_i32_14 : i32
      scf.if %33 {
        %cst_27 = arith.constant 0.000000e+00 : f32
        %48 = vector.broadcast %cst_27 : f32 to vector<1x128xf32>
        %c0_28 = arith.constant 0 : index
        %c0_29 = arith.constant 0 : index
        %49 = vector.load %arg11[%c0_28, %c0_29] : memref<1x128xf32, #tpu.memory_space<vmem>>, vector<1x128xf32>
        tpu.vector_store %arg11[%c0_28, %c0_29], %48 {strides = array<i32>} : memref<1x128xf32, #tpu.memory_space<vmem>>, vector<1x128xf32>,
        %cst_30 = arith.constant 0.000000e+00 : f32
        %50 = vector.broadcast %cst_30 : f32 to vector<1x128xf32>
        %c0_31 = arith.constant 0 : index
        %c0_32 = arith.constant 0 : index
        %51 = vector.load %arg12[%c0_31, %c0_32] : memref<1x128xf32, #tpu.memory_space<vmem>>, vector<1x128xf32>
        tpu.vector_store %arg12[%c0_31, %c0_32], %50 {strides = array<i32>} : memref<1x128xf32, #tpu.memory_space<vmem>>, vector<1x128xf32>,
      } else {
      }
      %c0_15 = arith.constant 0 : index
      %c0_16 = arith.constant 0 : index
      %34 = vector.load %arg11[%c0_15, %c0_16] : memref<1x128xf32, #tpu.memory_space<vmem>>, vector<1x128xf32>
      %cst_17 = arith.constant dense<0.000000e+00> : vector<128xf32>
      %35 = vector.multi_reduction <add>, %27, %cst_17 [0] : vector<16x128xf32> to vector<128xf32>
      %36 = vector.shape_cast %35 : vector<128xf32> to vector<1x128xf32>
      %37 = arith.addf %34, %36 : vector<1x128xf32>
      %c0_18 = arith.constant 0 : index
      %c0_19 = arith.constant 0 : index
      %38 = vector.load %arg11[%c0_18, %c0_19] : memref<1x128xf32, #tpu.memory_space<vmem>>, vector<1x128xf32>
      tpu.vector_store %arg11[%c0_18, %c0_19], %37 {strides = array<i32>} : memref<1x128xf32, #tpu.memory_space<vmem>>, vector<1x128xf32>,
      %c0_20 = arith.constant 0 : index
      %c0_21 = arith.constant 0 : index
      %39 = vector.load %arg12[%c0_20, %c0_21] : memref<1x128xf32, #tpu.memory_space<vmem>>, vector<1x128xf32>
      %40 = arith.mulf %27, %27 : vector<16x128xf32>
      %cst_22 = arith.constant dense<0.000000e+00> : vector<128xf32>
      %41 = vector.multi_reduction <add>, %40, %cst_22 [0] : vector<16x128xf32> to vector<128xf32>
      %42 = vector.shape_cast %41 : vector<128xf32> to vector<1x128xf32>
      %43 = arith.addf %39, %42 : vector<1x128xf32>
      %c0_23 = arith.constant 0 : index
      %c0_24 = arith.constant 0 : index
      %44 = vector.load %arg12[%c0_23, %c0_24] : memref<1x128xf32, #tpu.memory_space<vmem>>, vector<1x128xf32>
      tpu.vector_store %arg12[%c0_23, %c0_24], %43 {strides = array<i32>} : memref<1x128xf32, #tpu.memory_space<vmem>>, vector<1x128xf32>,
      %c0_i32_25 = arith.constant 0 : i32
      %45 = arith.cmpi eq, %arg1, %c0_i32_25 : i32
      %46 = arith.extui %45 : i1 to i32
      %c0_i32_26 = arith.constant 0 : i32
      %47 = arith.cmpi ne, %46, %c0_i32_26 : i32
      scf.if %47 {
        %c0_27 = arith.constant 0 : index
        %c0_28 = arith.constant 0 : index
        %48 = vector.load %arg11[%c0_27, %c0_28] : memref<1x128xf32, #tpu.memory_space<vmem>>, vector<1x128xf32>
        %cst_29 = arith.constant 6.250000e-02 : f32
        %49 = vector.broadcast %cst_29 : f32 to vector<1x128xf32>
        %50 = arith.mulf %48, %49 : vector<1x128xf32>
        %c0_30 = arith.constant 0 : index
        %c0_31 = arith.constant 0 : index
        %51 = vector.load %arg12[%c0_30, %c0_31] : memref<1x128xf32, #tpu.memory_space<vmem>>, vector<1x128xf32>
        %cst_32 = arith.constant 6.250000e-02 : f32
        %52 = vector.broadcast %cst_32 : f32 to vector<1x128xf32>
        %53 = arith.mulf %51, %52 : vector<1x128xf32>
        %54 = arith.mulf %50, %50 : vector<1x128xf32>
        %55 = arith.subf %53, %54 : vector<1x128xf32>
        %cst_33 = arith.constant 0.000000e+00 : f32
        %56 = vector.broadcast %cst_33 : f32 to vector<1x128xf32>
        %57 = arith.maximumf %55, %56 : vector<1x128xf32>
        %c0_34 = arith.constant 0 : index
        %c0_35 = arith.constant 0 : index
        %c0_36 = arith.constant 0 : index
        %58 = vector.load %arg5[%c0_34, %c0_35, %c0_36] : memref<1x1x128xf32, #tpu.memory_space<vmem>>, vector<1x1x128xf32>
        %59 = vector.shape_cast %58 : vector<1x1x128xf32> to vector<1x128xf32>
        %cst_37 = arith.constant 9.99999974E-6 : f32
        %60 = vector.broadcast %cst_37 : f32 to vector<1x128xf32>
        %61 = arith.addf %57, %60 : vector<1x128xf32>
        %62 = math.rsqrt %61 : vector<1x128xf32>
        %63 = arith.mulf %59, %62 : vector<1x128xf32>
        %c0_38 = arith.constant 0 : index
        %c0_39 = arith.constant 0 : index
        %64 = vector.load %arg13[%c0_38, %c0_39] : memref<1x128xf32, #tpu.memory_space<vmem>>, vector<1x128xf32>
        tpu.vector_store %arg13[%c0_38, %c0_39], %63 {strides = array<i32>} : memref<1x128xf32, #tpu.memory_space<vmem>>, vector<1x128xf32>,
        %c0_40 = arith.constant 0 : index
        %c0_41 = arith.constant 0 : index
        %c0_42 = arith.constant 0 : index
        %65 = vector.load %arg6[%c0_40, %c0_41, %c0_42] : memref<1x1x128xf32, #tpu.memory_space<vmem>>, vector<1x1x128xf32>
        %66 = vector.shape_cast %65 : vector<1x1x128xf32> to vector<1x128xf32>
        %67 = arith.mulf %50, %63 : vector<1x128xf32>
        %68 = arith.subf %66, %67 : vector<1x128xf32>
        %c0_43 = arith.constant 0 : index
        %c0_44 = arith.constant 0 : index
        %69 = vector.load %arg14[%c0_43, %c0_44] : memref<1x128xf32, #tpu.memory_space<vmem>>, vector<1x128xf32>
        tpu.vector_store %arg14[%c0_43, %c0_44], %68 {strides = array<i32>} : memref<1x128xf32, #tpu.memory_space<vmem>>, vector<1x128xf32>,
      } else {
      }
    } else {
    }
    %c2_i32 = arith.constant 2 : i32
    %10 = arith.cmpi eq, %arg0, %c2_i32 : i32
    %11 = arith.extui %10 : i1 to i32
    %c0_i32_3 = arith.constant 0 : i32
    %12 = arith.cmpi ne, %11, %c0_i32_3 : i32
    scf.if %12 {
      %13 = arith.index_cast %1 : i32 to index
      %c0 = arith.constant 0 : index
      %14 = vector.load %arg10[%13, %c0] : memref<16x128xbf16, #tpu.memory_space<vmem>>, vector<16x128xbf16>
      %15 = arith.extf %14 : vector<16x128xbf16> to vector<16x128xf32>
      %c0_4 = arith.constant 0 : index
      %c0_5 = arith.constant 0 : index
      %16 = vector.load %arg13[%c0_4, %c0_5] : memref<1x128xf32, #tpu.memory_space<vmem>>, vector<1x128xf32>
      %17 = vector.broadcast %16 : vector<1x128xf32> to vector<16x128xf32>
      %18 = arith.mulf %15, %17 : vector<16x128xf32>
      %c0_6 = arith.constant 0 : index
      %c0_7 = arith.constant 0 : index
      %19 = vector.load %arg14[%c0_6, %c0_7] : memref<1x128xf32, #tpu.memory_space<vmem>>, vector<1x128xf32>
      %20 = vector.broadcast %19 : vector<1x128xf32> to vector<16x128xf32>
      %21 = arith.addf %18, %20 : vector<16x128xf32>
      %cst = arith.constant 0.000000e+00 : f32
      %22 = vector.broadcast %cst : f32 to vector<16x128xf32>
      %23 = arith.maximumf %21, %22 : vector<16x128xf32>
      %24 = arith.truncf %23 : vector<16x128xf32> to vector<16x128xbf16>
      %c0_8 = arith.constant 0 : index
      %c0_9 = arith.constant 0 : index
      %25 = vector.load %arg7[%c0_8, %c0_9] : memref<128x128xbf16, #tpu.memory_space<vmem>>, vector<128x128xbf16>
      %cst_10 = arith.constant dense<0.000000e+00> : vector<16x128xf32>
      %26 = tpu.matmul %24, %25, %cst_10 {dimension_numbers = #tpu.dot_dimension_numbers<[1], [0], [0], [1], [0, 0, 1, 1], [], []>} : vector<16x128xbf16>, vector<128x128xbf16>, vector<16x128xf32> -> vector<16x128xf32>
      %c0_11 = arith.constant 0 : index
      %c0_12 = arith.constant 0 : index
      %27 = vector.load %arg8[%c0_11, %c0_12] : memref<1x128xf32, #tpu.memory_space<vmem>>, vector<1x128xf32>
      %28 = vector.broadcast %27 : vector<1x128xf32> to vector<16x128xf32>
      %29 = arith.addf %26, %28 : vector<16x128xf32>
      %30 = math.tanh %29 : vector<16x128xf32>
      %c0_13 = arith.constant 0 : index
      %c0_14 = arith.constant 0 : index
      %31 = vector.load %arg9[%c0_13, %c0_14] : memref<16x128xf32, #tpu.memory_space<vmem>>, vector<16x128xf32>
      tpu.vector_store %arg9[%c0_13, %c0_14], %30 {strides = array<i32>} : memref<16x128xf32, #tpu.memory_space<vmem>>, vector<16x128xf32>,
    } else {
    }
    return
  }
  func.func @transform_0(%arg0: i32, %arg1: i32) -> (i32, i32) {
    %c0_i32 = arith.constant 0 : i32
    %0 = arith.cmpi eq, %arg0, %c0_i32 : i32
    %c0_i32_0 = arith.constant 0 : i32
    %1 = arith.select %0, %arg1, %c0_i32_0 : i32
    %c0_i32_1 = arith.constant 0 : i32
    %c0_i32_2 = arith.constant 0 : i32
    return %1, %c0_i32_1 : i32, i32
  }
  func.func @transform_1(%arg0: i32, %arg1: i32) -> (i32, i32) {
    %c0_i32 = arith.constant 0 : i32
    %c0_i32_0 = arith.constant 0 : i32
    %c0_i32_1 = arith.constant 0 : i32
    return %c0_i32, %c0_i32_0 : i32, i32
  }
  func.func @transform_2(%arg0: i32, %arg1: i32) -> (i32, i32, i32) {
    %c1_i32 = arith.constant 1 : i32
    %0 = arith.subi %arg0, %c1_i32 : i32
    %c0_i32 = arith.constant 0 : i32
    %c0_i32_0 = arith.constant 0 : i32
    %1 = arith.maxsi %c0_i32, %0 : i32
    %2 = arith.minsi %c0_i32_0, %1 : i32
    %c0_i32_1 = arith.constant 0 : i32
    %c0_i32_2 = arith.constant 0 : i32
    %c0_i32_3 = arith.constant 0 : i32
    return %2, %c0_i32_1, %c0_i32_2 : i32, i32, i32
  }
  func.func @transform_3(%arg0: i32, %arg1: i32) -> (i32, i32, i32) {
    %c1_i32 = arith.constant 1 : i32
    %0 = arith.minsi %arg0, %c1_i32 : i32
    %c0_i32 = arith.constant 0 : i32
    %c0_i32_0 = arith.constant 0 : i32
    %c0_i32_1 = arith.constant 0 : i32
    return %0, %c0_i32, %c0_i32_0 : i32, i32, i32
  }
  func.func @transform_4(%arg0: i32, %arg1: i32) -> (i32, i32, i32) {
    %c1_i32 = arith.constant 1 : i32
    %0 = arith.minsi %arg0, %c1_i32 : i32
    %c0_i32 = arith.constant 0 : i32
    %c0_i32_0 = arith.constant 0 : i32
    %c0_i32_1 = arith.constant 0 : i32
    return %0, %c0_i32, %c0_i32_0 : i32, i32, i32
  }
  func.func @transform_5(%arg0: i32, %arg1: i32) -> (i32, i32) {
    %c0_i32 = arith.constant 0 : i32
    %c0_i32_0 = arith.constant 0 : i32
    %c0_i32_1 = arith.constant 0 : i32
    return %c0_i32, %c0_i32_0 : i32, i32
  }
  func.func @transform_6(%arg0: i32, %arg1: i32) -> (i32, i32) {
    %c0_i32 = arith.constant 0 : i32
    %c0_i32_0 = arith.constant 0 : i32
    %c0_i32_1 = arith.constant 0 : i32
    return %c0_i32, %c0_i32_0 : i32, i32
  }
  func.func @transform_7(%arg0: i32, %arg1: i32) -> (i32, i32) {
    %c2_i32 = arith.constant 2 : i32
    %0 = arith.cmpi eq, %arg0, %c2_i32 : i32
    %c0_i32 = arith.constant 0 : i32
    %1 = arith.select %0, %arg1, %c0_i32 : i32
    %c0_i32_0 = arith.constant 0 : i32
    %c0_i32_1 = arith.constant 0 : i32
    return %1, %c0_i32_0 : i32, i32
  }
}

</mosaic_0001>

<llo_original>
// kernel: tpu_custom_call.1
$region0: #{tpu_custom_call.1}
  #allocation0 [shape = 'u32[]', space=smem, size = 0x4, offset = 0x4, fixed_abs, tag = 'smem constant byte address 0x4 - core index']
  #allocation1 [shape = 'u32[72,128]{1,0:T(1,128)}', space=vmem, size = 0x9000, scoped, tag = 'internal scratch']
  #allocation2 [shape = 'bf16[16,128]{1,0:T(8,128)(2,1)}', space=vmem, size = 0x1000, scoped, tag = 'scratch operand']
  #allocation3 [shape = 'f32[1,128]{1,0:T(1,128)}', space=vmem, size = 0x200, scoped, tag = 'scratch operand']
  #allocation4 [shape = 'f32[1,128]{1,0:T(1,128)}', space=vmem, size = 0x200, scoped, tag = 'scratch operand']
  #allocation5 [shape = 'f32[1,128]{1,0:T(1,128)}', space=vmem, size = 0x200, scoped, tag = 'scratch operand']
  #allocation6 [shape = 'f32[1,128]{1,0:T(1,128)}', space=vmem, size = 0x200, scoped, tag = 'scratch operand']
  %s0 = inlined_call_operand.hbm [shape: bf16[16,128], index: 0, kind: input, shape index: {}]
  %s1 = inlined_call_operand.hbm [shape: bf16[128,128], index: 1, kind: input, shape index: {}]
  %s2 = inlined_call_operand.hbm [shape: bf16[1,128,128], index: 2, kind: input, shape index: {}]
  %s3 = inlined_call_operand.vmem [shape: f32[2,1,128], index: 3, kind: input, shape index: {}]
  %s4 = inlined_call_operand.hbm [shape: f32[2,1,128], index: 4, kind: input, shape index: {}]
  %s5 = inlined_call_operand.hbm [shape: bf16[128,128], index: 5, kind: input, shape index: {}]
  %s6 = inlined_call_operand.vmem [shape: f32[1,128], index: 6, kind: input, shape index: {}]
  %s7 = inlined_call_operand.hbm [shape: f32[16,128], index: 7, kind: output, shape index: {}]
  %s8 = sld [smem:[#allocation0]]
  $region109: #{tpu_custom_call.1} parent=0
    _
  %s10 = ssub.s32 1, %s8
  %s11 = scalar_select 0, %s10, %s8
  $region1: #{tpu_custom_call.1} parent=0
    #allocation7 [shape = 'u8[8192]{0}', space=vmem, size = 0x2000, scoped, tag = 'input window, operand 0']
    #allocation8 [shape = 's32[2]{0}', space=sflag, size = 0x8, scoped, tag = 'scoped memory for tpu_custom_call.1']
    #allocation9 [shape = 's32[2]{0}', space=sflag, size = 0x8, scoped, tag = 'scoped memory for tpu_custom_call.1']
    #allocation10 [shape = 'u8[32768]{0}', space=vmem, size = 0x8000, scoped, tag = 'input window, operand 1, single buffered']
    #allocation11 [shape = 's32[1]{0}', space=sflag, size = 0x4, scoped, tag = 'scoped memory for tpu_custom_call.1']
    #allocation12 [shape = 'u8[65536]{0}', space=vmem, size = 0x10000, scoped, tag = 'input window, operand 2']
    #allocation13 [shape = 'u8[1024]{0}', space=vmem, size = 0x400, scoped, tag = 'input window, operand 4']
    #allocation14 [shape = 'u8[32768]{0}', space=vmem, size = 0x8000, scoped, tag = 'input window, operand 5, single buffered']
    #allocation15 [shape = 'u8[16384]{0}', space=vmem, size = 0x4000, scoped, tag = 'output window, operand 0']
    %12 = vsyncpa [#allocation8], 0
    %s13 = scalar_lea.sflag [#allocation8], 1
    %14 = vsyncpa %s13, 0
    %15 = vsyncpa [#allocation11], 0
    %16 = vsyncpa [#allocation9], 0
    %s17 = scalar_lea.sflag [#allocation9], 1
    %18 = vsyncpa %s17, 0
    loop: start=0, step=1, limit=5
    $region2: #{tpu_custom_call.1} parent=1 // loop_pre_header
      _
    $region3: #{tpu_custom_call.1} parent=1 // loop_header
      %s20 = sphi 0, %s24
      %p21 = scmp.ge.s32.totalorder %s20, 5
      %s27 = sphi 0, %s39
      %s28 = sphi 0, %s35
      %s29 = sphi 0, %s27
      %s30 = sphi 0, %s28
      %s31 = sphi 0, %s29
      %s32 = sphi 0, %s30
      %s46 = sphi 0, %s48
      %s49 = sphi 0, %s46
      %s50 = sphi 0, %s49
      %s66 = sphi 0, %s50
      %s70 = sphi 0, %s70
      %s72 = sphi 0, %s70
      %s73 = sphi 0, %s72
      %s87 = sphi 0, %s73
      %s103 = sphi 0, %s105
      %s106 = sphi 0, %s103
      %s107 = sphi 0, %s106
      %s123 = sphi 0, %s107
      %s133 = sphi 0, %s135
      %s136 = sphi 0, %s133
      %s137 = sphi 0, %s136
      %s153 = sphi 0, %s137
      %s163 = sphi 0, %s165
      %s166 = sphi 0, %s163
      %s167 = sphi 0, %s166
      %s183 = sphi 0, %s167
      %s187 = sphi 0, %s187
      %s189 = sphi 0, %s187
      %s190 = sphi 0, %s189
      %s204 = sphi 0, %s190
      %s208 = sphi 0, %s208
      %s210 = sphi 0, %s208
      %s211 = sphi 0, %s210
      %s225 = sphi 0, %s211
      %s235 = sphi 0, %s237
      %s238 = sphi 0, %s235
      %s239 = sphi 0, %s238
      %s255 = sphi 0, %s239
    $region4: #{tpu_custom_call.1} parent=1 // loop_header_branch
      %23 = sbr.rel (%p21) target = $region8
    $region5: #{tpu_custom_call.1} parent=1 // loop_body
      %s25 = ssub.s32 %s20, 1
      %s26 = ssub.s32 %s20, 2
      %s33 = sadd.s32 1, %s28
      %p34 = scmp.ge.s32.totalorder %s33, 1
      %s35 = scalar_select %p34, 0, %s33
      %s36 = sadd.s32 1, %s27
      %s37 = scalar_select %p34, %s36, %s27
      %p38 = scmp.ge.s32.totalorder %s37, 3
      %s39 = scalar_select %p38, 0, %s37
      %p40 = scmp.eq.s32.totalorder %s27, 0
      %s41 = scalar_select %p40, %s28, 0
      %p42 = scmp.eq.s32.totalorder %s39, 0
      %s43 = scalar_select %p42, %s35, 0
      %s44 = ssub.s32 %s41, %s43
      %p45 = scmp.eq.s32.totalorder %s44, 0
      %s47 = sadd.s32 %s46, 1
      %s48 = scalar_select %p45, %s46, %s47
      %p51 = pneg %p45
      %p52 = scmp.eq.s32.totalorder %s20, 2
      %p53 = por %p51, %p52
      %p54 = scmp.ne.s32.totalorder %s46, %s49
      %p55 = scmp.eq.s32.totalorder %s20, 0
      %p56 = por %p54, %p55
      %p57 = scmp.ne.s32.totalorder %s46, %s49
      %p58 = scmp.eq.s32.totalorder %s25, 2
      %p59 = por %p57, %p58
      %p60 = scmp.ne.s32.totalorder %s49, %s50
      %p61 = scmp.eq.s32.totalorder %s25, 0
      %p62 = por %p60, %p61
      %p63 = scmp.ne.s32.totalorder %s49, %s50
      %p64 = scmp.eq.s32.totalorder %s26, 2
      %p65 = por %p63, %p64
      %p67 = scmp.ne.s32.totalorder %s50, %s66
      %p68 = scmp.eq.s32.totalorder %s26, 0
      %p69 = por %p67, %p68
      %s71 = sadd.s32 %s70, 1
      %p74 = scmp.eq.s32.totalorder %s20, 2
      %p75 = scmp.ne.s32.totalorder %s70, %s72
      %p76 = scmp.eq.s32.totalorder %s20, 0
      %p77 = por %p75, %p76
      %p78 = scmp.ne.s32.totalorder %s70, %s72
      %p79 = scmp.eq.s32.totalorder %s25, 2
      %p80 = por %p78, %p79
      %p81 = scmp.ne.s32.totalorder %s72, %s73
      %p82 = scmp.eq.s32.totalorder %s25, 0
      %p83 = por %p81, %p82
      %p84 = scmp.ne.s32.totalorder %s72, %s73
      %p85 = scmp.eq.s32.totalorder %s26, 2
      %p86 = por %p84, %p85
      %p88 = scmp.ne.s32.totalorder %s73, %s87
      %p89 = scmp.eq.s32.totalorder %s26, 0
      %p90 = por %p88, %p89
      %s91 = ssub.s32 %s27, 1
      %p92 = scmp.gt.s32.totalorder %s91, 0
      %s93 = scalar_select %p92, %s91, 0
      %p94 = scmp.lt.s32.totalorder %s93, 0
      %s95 = scalar_select %p94, %s93, 0
      %s96 = ssub.s32 %s39, 1
      %p97 = scmp.gt.s32.totalorder %s96, 0
      %s98 = scalar_select %p97, %s96, 0
      %p99 = scmp.lt.s32.totalorder %s98, 0
      %s100 = scalar_select %p99, %s98, 0
      %s101 = ssub.s32 %s95, %s100
      %p102 = scmp.eq.s32.totalorder %s101, 0
      %s104 = sadd.s32 %s103, 1
      %s105 = scalar_select %p102, %s103, %s104
      %p108 = pneg %p102
      %p109 = scmp.eq.s32.totalorder %s20, 2
      %p110 = por %p108, %p109
      %p111 = scmp.ne.s32.totalorder %s103, %s106
      %p112 = scmp.eq.s32.totalorder %s20, 0
      %p113 = por %p111, %p112
      %p114 = scmp.ne.s32.totalorder %s103, %s106
      %p115 = scmp.eq.s32.totalorder %s25, 2
      %p116 = por %p114, %p115
      %p117 = scmp.ne.s32.totalorder %s106, %s107
      %p118 = scmp.eq.s32.totalorder %s25, 0
      %p119 = por %p117, %p118
      %p120 = scmp.ne.s32.totalorder %s106, %s107
      %p121 = scmp.eq.s32.totalorder %s26, 2
      %p122 = por %p120, %p121
      %p124 = scmp.ne.s32.totalorder %s107, %s123
      %p125 = scmp.eq.s32.totalorder %s26, 0
      %p126 = por %p124, %p125
      %p127 = scmp.lt.s32.totalorder %s27, 1
      %s128 = scalar_select %p127, %s27, 1
      %p129 = scmp.lt.s32.totalorder %s39, 1
      %s130 = scalar_select %p129, %s39, 1
      %s131 = ssub.s32 %s128, %s130
      %p132 = scmp.eq.s32.totalorder %s131, 0
      %s134 = sadd.s32 %s133, 1
      %s135 = scalar_select %p132, %s133, %s134
      %p138 = pneg %p132
      %p139 = scmp.eq.s32.totalorder %s20, 2
      %p140 = por %p138, %p139
      %p141 = scmp.ne.s32.totalorder %s133, %s136
      %p142 = scmp.eq.s32.totalorder %s20, 0
      %p143 = por %p141, %p142
      %p144 = scmp.ne.s32.totalorder %s133, %s136
      %p145 = scmp.eq.s32.totalorder %s25, 2
      %p146 = por %p144, %p145
      %p147 = scmp.ne.s32.totalorder %s136, %s137
      %p148 = scmp.eq.s32.totalorder %s25, 0
      %p149 = por %p147, %p148
      %p150 = scmp.ne.s32.totalorder %s136, %s137
      %p151 = scmp.eq.s32.totalorder %s26, 2
      %p152 = por %p150, %p151
      %p154 = scmp.ne.s32.totalorder %s137, %s153
      %p155 = scmp.eq.s32.totalorder %s26, 0
      %p156 = por %p154, %p155
      %p157 = scmp.lt.s32.totalorder %s27, 1
      %s158 = scalar_select %p157, %s27, 1
      %p159 = scmp.lt.s32.totalorder %s39, 1
      %s160 = scalar_select %p159, %s39, 1
      %s161 = ssub.s32 %s158, %s160
      %p162 = scmp.eq.s32.totalorder %s161, 0
      %s164 = sadd.s32 %s163, 1
      %s165 = scalar_select %p162, %s163, %s164
      %p168 = pneg %p162
      %p169 = scmp.eq.s32.totalorder %s20, 2
      %p170 = por %p168, %p169
      %p171 = scmp.ne.s32.totalorder %s163, %s166
      %p172 = scmp.eq.s32.totalorder %s20, 0
      %p173 = por %p171, %p172
      %p174 = scmp.ne.s32.totalorder %s163, %s166
      %p175 = scmp.eq.s32.totalorder %s25, 2
      %p176 = por %p174, %p175
      %p177 = scmp.ne.s32.totalorder %s166, %s167
      %p178 = scmp.eq.s32.totalorder %s25, 0
      %p179 = por %p177, %p178
      %p180 = scmp.ne.s32.totalorder %s166, %s167
      %p181 = scmp.eq.s32.totalorder %s26, 2
      %p182 = por %p180, %p181
      %p184 = scmp.ne.s32.totalorder %s167, %s183
      %p185 = scmp.eq.s32.totalorder %s26, 0
      %p186 = por %p184, %p185
      %s188 = sadd.s32 %s187, 1
      %p191 = scmp.eq.s32.totalorder %s20, 2
      %p192 = scmp.ne.s32.totalorder %s187, %s189
      %p193 = scmp.eq.s32.totalorder %s20, 0
      %p194 = por %p192, %p193
      %p195 = scmp.ne.s32.totalorder %s187, %s189
      %p196 = scmp.eq.s32.totalorder %s25, 2
      %p197 = por %p195, %p196
      %p198 = scmp.ne.s32.totalorder %s189, %s190
      %p199 = scmp.eq.s32.totalorder %s25, 0
      %p200 = por %p198, %p199
      %p201 = scmp.ne.s32.totalorder %s189, %s190
      %p202 = scmp.eq.s32.totalorder %s26, 2
      %p203 = por %p201, %p202
      %p205 = scmp.ne.s32.totalorder %s190, %s204
      %p206 = scmp.eq.s32.totalorder %s26, 0
      %p207 = por %p205, %p206
      %s209 = sadd.s32 %s208, 1
      %p212 = scmp.eq.s32.totalorder %s20, 2
      %p213 = scmp.ne.s32.totalorder %s208, %s210
      %p214 = scmp.eq.s32.totalorder %s20, 0
      %p215 = por %p213, %p214
      %p216 = scmp.ne.s32.totalorder %s208, %s210
      %p217 = scmp.eq.s32.totalorder %s25, 2
      %p218 = por %p216, %p217
      %p219 = scmp.ne.s32.totalorder %s210, %s211
      %p220 = scmp.eq.s32.totalorder %s25, 0
      %p221 = por %p219, %p220
      %p222 = scmp.ne.s32.totalorder %s210, %s211
      %p223 = scmp.eq.s32.totalorder %s26, 2
      %p224 = por %p222, %p223
      %p226 = scmp.ne.s32.totalorder %s211, %s225
      %p227 = scmp.eq.s32.totalorder %s26, 0
      %p228 = por %p226, %p227
      %p229 = scmp.eq.s32.totalorder %s27, 2
      %s230 = scalar_select %p229, %s28, 0
      %p231 = scmp.eq.s32.totalorder %s39, 2
      %s232 = scalar_select %p231, %s35, 0
      %s233 = ssub.s32 %s230, %s232
      %p234 = scmp.eq.s32.totalorder %s233, 0
      %s236 = sadd.s32 %s235, 1
      %s237 = scalar_select %p234, %s235, %s236
      %p240 = pneg %p234
      %p241 = scmp.eq.s32.totalorder %s20, 2
      %p242 = por %p240, %p241
      %p243 = scmp.ne.s32.totalorder %s235, %s238
      %p244 = scmp.eq.s32.totalorder %s20, 0
      %p245 = por %p243, %p244
      %p246 = scmp.ne.s32.totalorder %s235, %s238
      %p247 = scmp.eq.s32.totalorder %s25, 2
      %p248 = por %p246, %p247
      %p249 = scmp.ne.s32.totalorder %s238, %s239
      %p250 = scmp.eq.s32.totalorder %s25, 0
      %p251 = por %p249, %p250
      %p252 = scmp.ne.s32.totalorder %s238, %s239
      %p253 = scmp.eq.s32.totalorder %s26, 2
      %p254 = por %p252, %p253
      %p256 = scmp.ne.s32.totalorder %s239, %s255
      %p257 = scmp.eq.s32.totalorder %s26, 0
      %p258 = por %p256, %p257
      %p259 = scmp.le.s32.totalorder 1, %s20
      %p260 = scmp.lt.s32.totalorder %s20, 4
      %p261 = pnand %p259, %p260
      %p262 = pneg %p261
      // Predicated region
      $region9: #{tpu_custom_call.1} parent=5 // pred_check
        _
      $region10: #{tpu_custom_call.1} parent=5 // pred_check_branch
        %264 = sbr.rel (%p261) target = $region12
      $region11: #{tpu_custom_call.1} parent=5 // pred_region
        %s265 = ssub.s32 %s20, 1
        // Predicated region
        $region13: #{tpu_custom_call.1} parent=11 // pred_check
          %p266 = pneg %p83
        $region14: #{tpu_custom_call.1} parent=11 // pred_check_branch
          %268 = sbr.rel (%p266) target = $region16
        $region15: #{tpu_custom_call.1} parent=11 // pred_region
          %270 = vsyncadd [#allocation11], 0
          %s271 = sshll.u32 %s1, 4
          %s272 = int_to_ptr.hbm [resolvable:$true] %s271
          %s273 = sshll.u32 [#allocation10], 4
          %s274 = int_to_ptr.vmem [resolvable:$true] %s273
          %279 = dma.hbm_to_vmem [thread:$0]  %s272, 1024, %s274, [#allocation11], 64, 64, 4
        $region16: #{tpu_custom_call.1} parent=11 // pred_fallthru
          _
        // Predicated region
        $region17: #{tpu_custom_call.1} parent=11 // pred_check
          %p280 = pneg %p200
        $region18: #{tpu_custom_call.1} parent=11 // pred_check_branch
          %282 = sbr.rel (%p280) target = $region20
        $region19: #{tpu_custom_call.1} parent=11 // pred_region
          %284 = vsyncadd [#allocation11], 0
          %s285 = sshll.u32 %s5, 4
          %s286 = int_to_ptr.hbm [resolvable:$true] %s285
          %s287 = sshll.u32 [#allocation14], 4
          %s288 = int_to_ptr.vmem [resolvable:$true] %s287
          %293 = dma.hbm_to_vmem [thread:$0]  %s286, 1024, %s288, [#allocation11], 64, 64, 4
        $region20: #{tpu_custom_call.1} parent=11 // pred_fallthru
          _
        // Predicated region
        $region21: #{tpu_custom_call.1} parent=11 // pred_check
          %p294 = pneg %p221
        $region22: #{tpu_custom_call.1} parent=11 // pred_check_branch
          %296 = sbr.rel (%p294) target = $region24
        $region23: #{tpu_custom_call.1} parent=11 // pred_region
          _
        $region24: #{tpu_custom_call.1} parent=11 // pred_fallthru
          _
      $region12: #{tpu_custom_call.1} parent=5 // pred_fallthru
        _
      %p297 = scmp.lt.s32.totalorder %s20, 3
      // Predicated region
      $region25: #{tpu_custom_call.1} parent=5 // pred_check
        %p298 = pneg %p297
      $region26: #{tpu_custom_call.1} parent=5 // pred_check_branch
        %300 = sbr.rel (%p298) target = $region28
      $region27: #{tpu_custom_call.1} parent=5 // pred_region
        // Predicated region
        $region29: #{tpu_custom_call.1} parent=27 // pred_check
          %p301 = pneg %p56
        $region30: #{tpu_custom_call.1} parent=27 // pred_check_branch
          %303 = sbr.rel (%p301) target = $region32
        $region31: #{tpu_custom_call.1} parent=27 // pred_region
          %s304 = sand.u32 %s20, 1
          %s305 = scalar_lea.sflag [#allocation8], %s304
          %s306 = sand.u32 %s46, 1
          %s307 = smul.addr %s306, 8
          %s308 = scalar_lea.vmem [#allocation7], %s307
          %p309 = scmp.eq.s32.totalorder %s27, 0
          %s310 = scalar_select %p309, %s28, 0
          %s311 = smul.u32 2, %s310
          %313 = vsyncadd %s305, 0
          %s314 = smul.addr %s311, 4
          %s315 = scalar_lea.hbm %s0, %s314
          %s316 = sshll.u32 %s315, 4
          %s317 = int_to_ptr.hbm [resolvable:$true] %s316
          %s318 = sshll.u32 %s308, 4
          %s319 = int_to_ptr.vmem [resolvable:$true] %s318
          %324 = dma.hbm_to_vmem [thread:$0]  %s317, 128, %s319, %s305, 64, 64, 4
        $region32: #{tpu_custom_call.1} parent=27 // pred_fallthru
          _
        // Predicated region
        $region33: #{tpu_custom_call.1} parent=27 // pred_check
          %p325 = pneg %p113
        $region34: #{tpu_custom_call.1} parent=27 // pred_check_branch
          %327 = sbr.rel (%p325) target = $region36
        $region35: #{tpu_custom_call.1} parent=27 // pred_region
          %s328 = sand.u32 %s20, 1
          %s329 = scalar_lea.sflag [#allocation8], %s328
          %s330 = sand.u32 %s103, 1
          %s331 = smul.addr %s330, 64
          %s332 = scalar_lea.vmem [#allocation12], %s331
          %s333 = ssub.s32 %s27, 1
          %p334 = scmp.gt.s32.totalorder %s333, 0
          %s335 = scalar_select %p334, %s333, 0
          %p336 = scmp.lt.s32.totalorder %s335, 0
          %s337 = scalar_select %p336, %s335, 0
          %339 = vsyncadd %s329, 0
          %s340 = smul.addr %s337, 16
          %s341 = smul.addr %s340, 4
          %s342 = scalar_lea.hbm %s2, %s341
          %s343 = sshll.u32 %s342, 4
          %s344 = int_to_ptr.hbm [resolvable:$true] %s343
          %s345 = sshll.u32 %s332, 4
          %s346 = int_to_ptr.vmem [resolvable:$true] %s345
          %351 = dma.hbm_to_vmem [thread:$0]  %s344, 1024, %s346, %s329, 64, 64, 4
        $region36: #{tpu_custom_call.1} parent=27 // pred_fallthru
          _
        // Predicated region
        $region37: #{tpu_custom_call.1} parent=27 // pred_check
          %p352 = pneg %p143
        $region38: #{tpu_custom_call.1} parent=27 // pred_check_branch
          %354 = sbr.rel (%p352) target = $region40
        $region39: #{tpu_custom_call.1} parent=27 // pred_region
          %p355 = scmp.lt.s32.totalorder %s27, 1
          %s356 = scalar_select %p355, %s27, 1
          %p357 = scmp.lt.s32.totalorder %s356, 1
          %s358 = scalar_select %p357, %s356, 1
          %s359 = scalar_lea.vmem %s3, %s358
          %p360 = scmp.lt.s32.totalorder %s27, 1
          %s361 = scalar_select %p360, %s27, 1
        $region40: #{tpu_custom_call.1} parent=27 // pred_fallthru
          _
        // Predicated region
        $region41: #{tpu_custom_call.1} parent=27 // pred_check
          %p362 = pneg %p173
        $region42: #{tpu_custom_call.1} parent=27 // pred_check_branch
          %364 = sbr.rel (%p362) target = $region44
        $region43: #{tpu_custom_call.1} parent=27 // pred_region
          %s365 = sand.u32 %s20, 1
          %s366 = scalar_lea.sflag [#allocation8], %s365
          %s367 = sand.u32 %s163, 1
          %s368 = scalar_lea.vmem [#allocation13], %s367
          %p369 = scmp.lt.s32.totalorder %s27, 1
          %s370 = scalar_select %p369, %s27, 1
          %372 = vsyncadd %s366, 0
          %s373 = scalar_lea.hbm %s4, %s370
          %s375 = sshll.u32 %s373, 4
          %s376 = int_to_ptr.hbm [resolvable:$true] %s375
          %s377 = sshll.u32 %s368, 4
          %s378 = int_to_ptr.vmem [resolvable:$true] %s377
          %380 = dma.hbm_to_vmem [thread:$0]  %s376, 16, %s378, %s366
        $region44: #{tpu_custom_call.1} parent=27 // pred_fallthru
          _
      $region28: #{tpu_custom_call.1} parent=5 // pred_fallthru
        _
      %p381 = scmp.le.s32.totalorder 1, %s20
      %p382 = scmp.lt.s32.totalorder %s20, 4
      %p383 = pnand %p381, %p382
      %p384 = pneg %p383
      // Predicated region
      $region45: #{tpu_custom_call.1} parent=5 // pred_check
        _
      $region46: #{tpu_custom_call.1} parent=5 // pred_check_branch
        %386 = sbr.rel (%p383) target = $region48
      $region47: #{tpu_custom_call.1} parent=5 // pred_region
        %s387 = ssub.s32 %s20, 1
        %s388 = sand.u32 %s25, 1
        %s389 = scalar_lea.sflag [#allocation8], %s388
        %s390 = sand.u32 %s49, 1
        %s391 = smul.addr %s390, 8
        %s392 = scalar_lea.vmem [#allocation7], %s391
        // Predicated region
        $region49: #{tpu_custom_call.1} parent=47 // pred_check
          %p393 = pneg %p62
        $region50: #{tpu_custom_call.1} parent=47 // pred_check_branch
          %395 = sbr.rel (%p393) target = $region52
        $region51: #{tpu_custom_call.1} parent=47 // pred_region
          %397 = dma.done %s389, 128
        $region52: #{tpu_custom_call.1} parent=47 // pred_fallthru
          _
        // Predicated region
        $region53: #{tpu_custom_call.1} parent=47 // pred_check
          %p398 = pneg %p83
        $region54: #{tpu_custom_call.1} parent=47 // pred_check_branch
          %400 = sbr.rel (%p398) target = $region56
        $region55: #{tpu_custom_call.1} parent=47 // pred_region
          %402 = dma.done [#allocation11], 1024
        $region56: #{tpu_custom_call.1} parent=47 // pred_fallthru
          _
        %s403 = sand.u32 %s25, 1
        %s404 = scalar_lea.sflag [#allocation8], %s403
        %s405 = sand.u32 %s106, 1
        %s406 = smul.addr %s405, 64
        %s407 = scalar_lea.vmem [#allocation12], %s406
        // Predicated region
        $region57: #{tpu_custom_call.1} parent=47 // pred_check
          %p408 = pneg %p119
        $region58: #{tpu_custom_call.1} parent=47 // pred_check_branch
          %410 = sbr.rel (%p408) target = $region60
        $region59: #{tpu_custom_call.1} parent=47 // pred_region
          %412 = dma.done %s404, 1024
        $region60: #{tpu_custom_call.1} parent=47 // pred_fallthru
          _
        %s413 = sand.u32 %s25, 1
        %s414 = scalar_lea.sflag [#allocation8], %s413
        %s415 = sand.u32 %s166, 1
        %s416 = scalar_lea.vmem [#allocation13], %s415
        // Predicated region
        $region61: #{tpu_custom_call.1} parent=47 // pred_check
          %p417 = pneg %p179
        $region62: #{tpu_custom_call.1} parent=47 // pred_check_branch
          %419 = sbr.rel (%p417) target = $region64
        $region63: #{tpu_custom_call.1} parent=47 // pred_region
          %421 = dma.done %s414, 16
        $region64: #{tpu_custom_call.1} parent=47 // pred_fallthru
          _
        // Predicated region
        $region65: #{tpu_custom_call.1} parent=47 // pred_check
          %p422 = pneg %p200
        $region66: #{tpu_custom_call.1} parent=47 // pred_check_branch
          %424 = sbr.rel (%p422) target = $region68
        $region67: #{tpu_custom_call.1} parent=47 // pred_region
          %426 = dma.done [#allocation11], 1024
        $region68: #{tpu_custom_call.1} parent=47 // pred_fallthru
          _
        %s427 = sand.u32 %s25, 1
        %s428 = scalar_lea.sflag [#allocation8], %s427
        %s429 = sand.u32 %s49, 1
        %s430 = smul.addr %s429, 8
        %s431 = scalar_lea.vmem [#allocation7], %s430
        %p432 = pneg %p62
        %p433 = pneg %p59
        %p434 = pneg %p83
        %p435 = pneg %p80
        %s436 = sand.u32 %s25, 1
        %s437 = scalar_lea.sflag [#allocation8], %s436
        %s438 = sand.u32 %s106, 1
        %s439 = smul.addr %s438, 64
        %s440 = scalar_lea.vmem [#allocation12], %s439
        %p441 = pneg %p119
        %p442 = pneg %p116
        %p443 = scmp.lt.s32.totalorder %s29, 1
        %s444 = scalar_select %p443, %s29, 1
        %p445 = scmp.lt.s32.totalorder %s444, 1
        %s446 = scalar_select %p445, %s444, 1
        %s447 = scalar_lea.vmem %s3, %s446
        %p448 = pneg %p149
        %p449 = pneg %p146
        %s450 = sand.u32 %s25, 1
        %s451 = scalar_lea.sflag [#allocation8], %s450
        %s452 = sand.u32 %s166, 1
        %s453 = scalar_lea.vmem [#allocation13], %s452
        %p454 = pneg %p179
        %p455 = pneg %p176
        %p456 = pneg %p200
        %p457 = pneg %p197
        %p458 = pneg %p221
        %p459 = pneg %p218
        %p460 = pneg %p251
        %p461 = pneg %p248
        %s462 = sand.u32 %s238, 1
        %s463 = scalar_lea.sflag [#allocation9], %s462
        %s464 = sand.u32 %s238, 1
        %s465 = smul.addr %s464, 16
        %s466 = scalar_lea.vmem [#allocation15], %s465
        %p467 = scmp.eq.s32.totalorder %s29, 0
        %s468 = scalar_select %p467, %s30, 0
        %s469 = smul.u32 2, %s468
        %s470 = ssub.s32 %s29, 1
        %p471 = scmp.gt.s32.totalorder %s470, 0
        %s472 = scalar_select %p471, %s470, 0
        %p473 = scmp.lt.s32.totalorder %s472, 0
        %s474 = scalar_select %p473, %s472, 0
        %p475 = scmp.lt.s32.totalorder %s29, 1
        %s476 = scalar_select %p475, %s29, 1
        %p477 = scmp.lt.s32.totalorder %s476, 1
        %s478 = scalar_select %p477, %s476, 1
        %s479 = scalar_lea.vmem %s3, %s478
        %p480 = scmp.lt.s32.totalorder %s29, 1
        %s481 = scalar_select %p480, %s29, 1
        %p482 = scmp.lt.s32.totalorder %s29, 1
        %s483 = scalar_select %p482, %s29, 1
        %p484 = scmp.eq.s32.totalorder %s29, 2
        %s485 = scalar_select %p484, %s30, 0
        %s486 = smul.u32 2, %s485
        %s487 = smul.u32 %s30, 16
        %p488 = scmp.eq.s32.totalorder %s29, 0
        // Predicated region
        $region69: #{tpu_custom_call.1} parent=47 // pred_check
          %p489 = pneg %p488
        $region70: #{tpu_custom_call.1} parent=47 // pred_check_branch
          %491 = sbr.rel (%p489) target = $region72
        $region71: #{tpu_custom_call.1} parent=47 // pred_region
          %v492 = vld [vmem:[%s392] sm:$0xf]
          %v493 = vld [vmem:[%s392 + $0x4] sm:$0xf]
          %v494 = vld [vmem:[#allocation10] sm:$0xf]
          %v495 = vld [vmem:[#allocation10 + $0x4] sm:$0xf]
          %v496 = vld [vmem:[#allocation10 + $0x8] sm:$0xf]
          %v497 = vld [vmem:[#allocation10 + $0xc] sm:$0xf]
          %v498 = vld [vmem:[#allocation10 + $0x10] sm:$0xf]
          %v499 = vld [vmem:[#allocation10 + $0x14] sm:$0xf]
          %v500 = vld [vmem:[#allocation10 + $0x18] sm:$0xf]
          %v501 = vld [vmem:[#allocation10 + $0x1c] sm:$0xf]
          %v502 = vld [vmem:[#allocation10 + $0x20] sm:$0xf]
          %v503 = vld [vmem:[#allocation10 + $0x24] sm:$0xf]
          %v504 = vld [vmem:[#allocation10 + $0x28] sm:$0xf]
          %v505 = vld [vmem:[#allocation10 + $0x2c] sm:$0xf]
          %v506 = vld [vmem:[#allocation10 + $0x30] sm:$0xf]
          %v507 = vld [vmem:[#allocation10 + $0x34] sm:$0xf]
          %v508 = vld [vmem:[#allocation10 + $0x38] sm:$0xf]
          %v509 = vld [vmem:[#allocation10 + $0x3c] sm:$0xf]
          %v512 = vunpack.c.l.b16 %v492
          %v513 = vunpack.c.l.b16 %v493
          %v514 = vpack.c.b16 %v513, %v512
          %v532 = vunpack.c.l.b16 %v494
          %v533 = vunpack.c.l.b16 %v495
          %v534 = vunpack.c.l.b16 %v496
          %v535 = vunpack.c.l.b16 %v497
          %v536 = vunpack.c.l.b16 %v498
          %v537 = vunpack.c.l.b16 %v499
          %v538 = vunpack.c.l.b16 %v500
          %v539 = vunpack.c.l.b16 %v501
          %v540 = vunpack.c.l.b16 %v502
          %v541 = vunpack.c.l.b16 %v503
          %v542 = vunpack.c.l.b16 %v504
          %v543 = vunpack.c.l.b16 %v505
          %v544 = vunpack.c.l.b16 %v506
          %v545 = vunpack.c.l.b16 %v507
          %v546 = vunpack.c.l.b16 %v508
          %v547 = vunpack.c.l.b16 %v509
          %v548 = vpack.c.b16 %v533, %v532
          %v549 = vpack.c.b16 %v535, %v534
          %v550 = vpack.c.b16 %v537, %v536
          %v551 = vpack.c.b16 %v539, %v538
          %v552 = vpack.c.b16 %v541, %v540
          %v553 = vpack.c.b16 %v543, %v542
          %v554 = vpack.c.b16 %v545, %v544
          %v555 = vpack.c.b16 %v547, %v546
          %564 = vmatpush.bf16.msra.mxu0 %v555
          %565 = vmatpush.bf16.msra.mxu0 %v554
          %566 = vmatpush.bf16.msra.mxu0 %v553
          %567 = vmatpush.bf16.msra.mxu0 %v552
          %568 = vmatpush.bf16.msra.mxu0 %v551
          %569 = vmatpush.bf16.msra.mxu0 %v550
          %570 = vmatpush.bf16.msra.mxu0 %v549
          %571 = vmatpush.bf16.msra.mxu0 %v548
          %572 = vmatmul.bf16.gmra.mxu0 %v514
          %v573 = vpop.f32.mrf.mxu0
          %v574 = vadd.f32 0.0, %v573
          %v575 = vpop.f32.mrf.mxu0
          %v576 = vadd.f32 0.0, %v575
          %577 = vdwg.mxu0
          %v578 = vpack.c.bf16 %v574, %v574
          %v579 = vpack.c.bf16 %v576, %v576
          %s580 = sshra.s32 %s487, 3
          %s581 = sand.u32 %s487, 7
          %s582 = smul.addr %s580, 4
          %s583 = scalar_lea.vmem [#allocation2], %s582
          %584 = vst [vmem:[%s583] sm:$0xf] %v578
          %585 = vst [vmem:[%s583 + $0x4] sm:$0xf] %v579
          %p586 = scmp.eq.s32.totalorder %s30, 0
          // Predicated region
          $region73: #{tpu_custom_call.1} parent=71 // pred_check
            %p587 = pneg %p586
          $region74: #{tpu_custom_call.1} parent=71 // pred_check_branch
            %589 = sbr.rel (%p587) target = $region76
          $region75: #{tpu_custom_call.1} parent=71 // pred_region
            %590 = vst [vmem:[#allocation3] sm:$0x1] 0.0
            %591 = vst [vmem:[#allocation4] sm:$0x1] 0.0
          $region76: #{tpu_custom_call.1} parent=71 // pred_fallthru
            _
          %v592 = vld [vmem:[#allocation3] sm:$0x1]
          %v593 = vadd.f32 %v574, %v576
          %v594 = vrot.slane %v593, 4
          %v595 = vadd.f32 %v593, %v594
          %v596 = vrot.slane %v595, 2
          %v597 = vadd.f32 %v595, %v596
          %v598 = vrot.slane %v597, 1
          %v599 = vadd.f32 %v597, %v598
          %v600 = vadd.f32 %v592, %v599
          %601 = vst [vmem:[#allocation3] sm:$0x1] %v600
          %v602 = vld [vmem:[#allocation4] sm:$0x1]
          %v603 = vmul.f32 %v574, %v574
          %v604 = vmul.f32 %v576, %v576
          %v605 = vadd.f32 %v603, %v604
          %v606 = vrot.slane %v605, 4
          %v607 = vadd.f32 %v605, %v606
          %v608 = vrot.slane %v607, 2
          %v609 = vadd.f32 %v607, %v608
          %v610 = vrot.slane %v609, 1
          %v611 = vadd.f32 %v609, %v610
          %v612 = vadd.f32 %v602, %v611
          %613 = vst [vmem:[#allocation4] sm:$0x1] %v612
          // Predicated region
          $region77: #{tpu_custom_call.1} parent=71 // pred_check
            %p614 = pneg %p586
          $region78: #{tpu_custom_call.1} parent=71 // pred_check_branch
            %616 = sbr.rel (%p614) target = $region80
          $region79: #{tpu_custom_call.1} parent=71 // pred_region
            %v617 = vld [vmem:[#allocation3] sm:$0x1]
            %v618 = vmul.f32 %v617, 0.0625
            %v619 = vld [vmem:[#allocation4] sm:$0x1]
            %v620 = vmul.f32 %v619, 0.0625
            %v621 = vmul.f32 %v618, %v618
            %v622 = vsub.f32 %v620, %v621
            %v623 = vmax.f32 %v622, 0.0
            %v624 = vld [vmem:[%s479] sm:$0x1]
            %v625 = vadd.f32 %v623, 1e-05
            %v626 = vrsqrt.pop %v625
            %v627 = vmul.f32 %v626, %v625
            %v628 = vmul.f32 %v627, %v626
            %v629 = vmul.f32 0.5, %v628
            %v630 = vsub.f32 1.5, %v629
            %v631 = vmul.f32 %v626, %v630
            %vm632 = vweird.f32 %v625
            %vm633 = vweird.f32 %v626
            %vm634 = vmor %vm632, %vm633
            %v635 = vsel %vm634, %v626, %v631
            %v636 = vmul.f32 %v624, %v635
            %637 = vst [vmem:[#allocation5] sm:$0x1] %v636
            %v638 = vld [vmem:[%s416] sm:$0x1]
            %v639 = vmul.f32 %v618, %v636
            %v640 = vsub.f32 %v638, %v639
            %641 = vst [vmem:[#allocation6] sm:$0x1] %v640
          $region80: #{tpu_custom_call.1} parent=71 // pred_fallthru
            _
        $region72: #{tpu_custom_call.1} parent=47 // pred_fallthru
          _
        %p642 = scmp.ge.s32.totalorder %s29, 1
        %p643 = scmp.le.s32.totalorder %s29, 1
        %p644 = pnand %p642, %p643
        %p645 = pneg %p644
        // Predicated region
        $region81: #{tpu_custom_call.1} parent=47 // pred_check
          _
        $region82: #{tpu_custom_call.1} parent=47 // pred_check_branch
          %647 = sbr.rel (%p644) target = $region84
        $region83: #{tpu_custom_call.1} parent=47 // pred_region
          %s648 = sshra.s32 %s487, 3
          %s649 = sand.u32 %s487, 7
          %s650 = smul.addr %s648, 4
          %s651 = scalar_lea.vmem [#allocation2], %s650
          %v652 = vld [vmem:[%s651] sm:$0xf]
          %v653 = vld [vmem:[%s651 + $0x4] sm:$0xf]
          %v654 = vunpack.c.l.bf16 %v652
          %v655 = vunpack.c.l.bf16 %v653
          %v656 = vld [vmem:[#allocation5] sm:$0x1]
          %v658 = vperm.slane %v656, 0
          %v660 = vmul.f32 %v654, %v658
          %v661 = vmul.f32 %v655, %v658
          %v662 = vld [vmem:[#allocation6] sm:$0x1]
          %v664 = vperm.slane %v662, 0
          %v666 = vadd.f32 %v660, %v664
          %v667 = vadd.f32 %v661, %v664
          %v668 = vmax.f32 %v666, 0.0
          %v669 = vmax.f32 %v667, 0.0
          %v670 = vpack.c.bf16 %v669, %v668
          %v671 = vld [vmem:[%s407] sm:$0xf]
          %v672 = vld [vmem:[%s407 + $0x4] sm:$0xf]
          %v673 = vld [vmem:[%s407 + $0x8] sm:$0xf]
          %v674 = vld [vmem:[%s407 + $0xc] sm:$0xf]
          %v675 = vld [vmem:[%s407 + $0x10] sm:$0xf]
          %v676 = vld [vmem:[%s407 + $0x14] sm:$0xf]
          %v677 = vld [vmem:[%s407 + $0x18] sm:$0xf]
          %v678 = vld [vmem:[%s407 + $0x1c] sm:$0xf]
          %v679 = vld [vmem:[%s407 + $0x20] sm:$0xf]
          %v680 = vld [vmem:[%s407 + $0x24] sm:$0xf]
          %v681 = vld [vmem:[%s407 + $0x28] sm:$0xf]
          %v682 = vld [vmem:[%s407 + $0x2c] sm:$0xf]
          %v683 = vld [vmem:[%s407 + $0x30] sm:$0xf]
          %v684 = vld [vmem:[%s407 + $0x34] sm:$0xf]
          %v685 = vld [vmem:[%s407 + $0x38] sm:$0xf]
          %v686 = vld [vmem:[%s407 + $0x3c] sm:$0xf]
          %v703 = vunpack.c.l.b16 %v671
          %v704 = vunpack.c.l.b16 %v672
          %v705 = vunpack.c.l.b16 %v673
          %v706 = vunpack.c.l.b16 %v674
          %v707 = vunpack.c.l.b16 %v675
          %v708 = vunpack.c.l.b16 %v676
          %v709 = vunpack.c.l.b16 %v677
          %v710 = vunpack.c.l.b16 %v678
          %v711 = vunpack.c.l.b16 %v679
          %v712 = vunpack.c.l.b16 %v680
          %v713 = vunpack.c.l.b16 %v681
          %v714 = vunpack.c.l.b16 %v682
          %v715 = vunpack.c.l.b16 %v683
          %v716 = vunpack.c.l.b16 %v684
          %v717 = vunpack.c.l.b16 %v685
          %v718 = vunpack.c.l.b16 %v686
          %v719 = vpack.c.b16 %v704, %v703
          %v720 = vpack.c.b16 %v706, %v705
          %v721 = vpack.c.b16 %v708, %v707
          %v722 = vpack.c.b16 %v710, %v709
          %v723 = vpack.c.b16 %v712, %v711
          %v724 = vpack.c.b16 %v714, %v713
          %v725 = vpack.c.b16 %v716, %v715
          %v726 = vpack.c.b16 %v718, %v717
          %735 = vmatpush.bf16.msra.mxu0 %v726
          %736 = vmatpush.bf16.msra.mxu0 %v725
          %737 = vmatpush.bf16.msra.mxu0 %v724
          %738 = vmatpush.bf16.msra.mxu0 %v723
          %739 = vmatpush.bf16.msra.mxu0 %v722
          %740 = vmatpush.bf16.msra.mxu0 %v721
          %741 = vmatpush.bf16.msra.mxu0 %v720
          %742 = vmatpush.bf16.msra.mxu0 %v719
          %743 = vmatmul.bf16.gmra.mxu0 %v670
          %v744 = vpop.f32.mrf.mxu0
          %v745 = vadd.f32 0.0, %v744
          %v746 = vpop.f32.mrf.mxu0
          %v747 = vadd.f32 0.0, %v746
          %748 = vdwg.mxu0
          %v749 = vpack.c.bf16 %v745, %v745
          %v750 = vpack.c.bf16 %v747, %v747
          %751 = vst [vmem:[%s651] sm:$0xf] %v749
          %752 = vst [vmem:[%s651 + $0x4] sm:$0xf] %v750
          %p753 = scmp.eq.s32.totalorder %s30, 0
          // Predicated region
          $region85: #{tpu_custom_call.1} parent=83 // pred_check
            %p754 = pneg %p753
          $region86: #{tpu_custom_call.1} parent=83 // pred_check_branch
            %756 = sbr.rel (%p754) target = $region88
          $region87: #{tpu_custom_call.1} parent=83 // pred_region
            %757 = vst [vmem:[#allocation3] sm:$0x1] 0.0
            %758 = vst [vmem:[#allocation4] sm:$0x1] 0.0
          $region88: #{tpu_custom_call.1} parent=83 // pred_fallthru
            _
          %v759 = vld [vmem:[#allocation3] sm:$0x1]
          %v760 = vadd.f32 %v745, %v747
          %v761 = vrot.slane %v760, 4
          %v762 = vadd.f32 %v760, %v761
          %v763 = vrot.slane %v762, 2
          %v764 = vadd.f32 %v762, %v763
          %v765 = vrot.slane %v764, 1
          %v766 = vadd.f32 %v764, %v765
          %v767 = vadd.f32 %v759, %v766
          %768 = vst [vmem:[#allocation3] sm:$0x1] %v767
          %v769 = vld [vmem:[#allocation4] sm:$0x1]
          %v770 = vmul.f32 %v745, %v745
          %v771 = vmul.f32 %v747, %v747
          %v772 = vadd.f32 %v770, %v771
          %v773 = vrot.slane %v772, 4
          %v774 = vadd.f32 %v772, %v773
          %v775 = vrot.slane %v774, 2
          %v776 = vadd.f32 %v774, %v775
          %v777 = vrot.slane %v776, 1
          %v778 = vadd.f32 %v776, %v777
          %v779 = vadd.f32 %v769, %v778
          %780 = vst [vmem:[#allocation4] sm:$0x1] %v779
          // Predicated region
          $region89: #{tpu_custom_call.1} parent=83 // pred_check
            %p781 = pneg %p753
          $region90: #{tpu_custom_call.1} parent=83 // pred_check_branch
            %783 = sbr.rel (%p781) target = $region92
          $region91: #{tpu_custom_call.1} parent=83 // pred_region
            %v784 = vld [vmem:[#allocation3] sm:$0x1]
            %v785 = vmul.f32 %v784, 0.0625
            %v786 = vld [vmem:[#allocation4] sm:$0x1]
            %v787 = vmul.f32 %v786, 0.0625
            %v788 = vmul.f32 %v785, %v785
            %v789 = vsub.f32 %v787, %v788
            %v790 = vmax.f32 %v789, 0.0
            %v791 = vld [vmem:[%s479] sm:$0x1]
            %v792 = vadd.f32 %v790, 1e-05
            %v793 = vrsqrt.pop %v792
            %v794 = vmul.f32 %v793, %v792
            %v795 = vmul.f32 %v794, %v793
            %v796 = vmul.f32 0.5, %v795
            %v797 = vsub.f32 1.5, %v796
            %v798 = vmul.f32 %v793, %v797
            %vm799 = vweird.f32 %v792
            %vm800 = vweird.f32 %v793
            %vm801 = vmor %vm799, %vm800
            %v802 = vsel %vm801, %v793, %v798
            %v803 = vmul.f32 %v791, %v802
            %804 = vst [vmem:[#allocation5] sm:$0x1] %v803
            %v805 = vld [vmem:[%s416] sm:$0x1]
            %v806 = vmul.f32 %v785, %v803
            %v807 = vsub.f32 %v805, %v806
            %808 = vst [vmem:[#allocation6] sm:$0x1] %v807
          $region92: #{tpu_custom_call.1} parent=83 // pred_fallthru
            _
        $region84: #{tpu_custom_call.1} parent=47 // pred_fallthru
          _
        %p809 = scmp.eq.s32.totalorder %s29, 2
        // Predicated region
        $region93: #{tpu_custom_call.1} parent=47 // pred_check
          %p810 = pneg %p809
        $region94: #{tpu_custom_call.1} parent=47 // pred_check_branch
          %812 = sbr.rel (%p810) target = $region96
        $region95: #{tpu_custom_call.1} parent=47 // pred_region
          %s813 = sshra.s32 %s487, 3
          %s814 = sand.u32 %s487, 7
          %s815 = smul.addr %s813, 4
          %s816 = scalar_lea.vmem [#allocation2], %s815
          %v817 = vld [vmem:[%s816] sm:$0xf]
          %v818 = vld [vmem:[%s816 + $0x4] sm:$0xf]
          %v819 = vunpack.c.l.bf16 %v817
          %v820 = vunpack.c.l.bf16 %v818
          %v821 = vld [vmem:[#allocation5] sm:$0x1]
          %v823 = vperm.slane %v821, 0
          %v825 = vmul.f32 %v819, %v823
          %v826 = vmul.f32 %v820, %v823
          %v827 = vld [vmem:[#allocation6] sm:$0x1]
          %v829 = vperm.slane %v827, 0
          %v831 = vadd.f32 %v825, %v829
          %v832 = vadd.f32 %v826, %v829
          %v833 = vmax.f32 %v831, 0.0
          %v834 = vmax.f32 %v832, 0.0
          %v835 = vpack.c.bf16 %v834, %v833
          %v836 = vld [vmem:[#allocation14] sm:$0xf]
          %v837 = vld [vmem:[#allocation14 + $0x4] sm:$0xf]
          %v838 = vld [vmem:[#allocation14 + $0x8] sm:$0xf]
          %v839 = vld [vmem:[#allocation14 + $0xc] sm:$0xf]
          %v840 = vld [vmem:[#allocation14 + $0x10] sm:$0xf]
          %v841 = vld [vmem:[#allocation14 + $0x14] sm:$0xf]
          %v842 = vld [vmem:[#allocation14 + $0x18] sm:$0xf]
          %v843 = vld [vmem:[#allocation14 + $0x1c] sm:$0xf]
          %v844 = vld [vmem:[#allocation14 + $0x20] sm:$0xf]
          %v845 = vld [vmem:[#allocation14 + $0x24] sm:$0xf]
          %v846 = vld [vmem:[#allocation14 + $0x28] sm:$0xf]
          %v847 = vld [vmem:[#allocation14 + $0x2c] sm:$0xf]
          %v848 = vld [vmem:[#allocation14 + $0x30] sm:$0xf]
          %v849 = vld [vmem:[#allocation14 + $0x34] sm:$0xf]
          %v850 = vld [vmem:[#allocation14 + $0x38] sm:$0xf]
          %v851 = vld [vmem:[#allocation14 + $0x3c] sm:$0xf]
          %v852 = vld [vmem:[%s6] sm:$0x1]
          %v854 = vperm.slane %v852, 0
          %v872 = vunpack.c.l.b16 %v836
          %v873 = vunpack.c.l.b16 %v837
          %v874 = vunpack.c.l.b16 %v838
          %v875 = vunpack.c.l.b16 %v839
          %v876 = vunpack.c.l.b16 %v840
          %v877 = vunpack.c.l.b16 %v841
          %v878 = vunpack.c.l.b16 %v842
          %v879 = vunpack.c.l.b16 %v843
          %v880 = vunpack.c.l.b16 %v844
          %v881 = vunpack.c.l.b16 %v845
          %v882 = vunpack.c.l.b16 %v846
          %v883 = vunpack.c.l.b16 %v847
          %v884 = vunpack.c.l.b16 %v848
          %v885 = vunpack.c.l.b16 %v849
          %v886 = vunpack.c.l.b16 %v850
          %v887 = vunpack.c.l.b16 %v851
          %v888 = vpack.c.b16 %v873, %v872
          %v889 = vpack.c.b16 %v875, %v874
          %v890 = vpack.c.b16 %v877, %v876
          %v891 = vpack.c.b16 %v879, %v878
          %v892 = vpack.c.b16 %v881, %v880
          %v893 = vpack.c.b16 %v883, %v882
          %v894 = vpack.c.b16 %v885, %v884
          %v895 = vpack.c.b16 %v887, %v886
          %904 = vmatpush.bf16.msra.mxu0 %v895
          %905 = vmatpush.bf16.msra.mxu0 %v894
          %906 = vmatpush.bf16.msra.mxu0 %v893
          %907 = vmatpush.bf16.msra.mxu0 %v892
          %908 = vmatpush.bf16.msra.mxu0 %v891
          %909 = vmatpush.bf16.msra.mxu0 %v890
          %910 = vmatpush.bf16.msra.mxu0 %v889
          %911 = vmatpush.bf16.msra.mxu0 %v888
          %912 = vmatmul.bf16.gmra.mxu0 %v835
          %v913 = vpop.f32.mrf.mxu0
          %v914 = vadd.f32 %v854, %v913
          %v915 = vpop.f32.mrf.mxu0
          %v916 = vadd.f32 %v854, %v915
          %917 = vdwg.mxu0
          %v918 = vtanh.pop %v914
          %v919 = vtanh.pop %v916
          %920 = vst [vmem:[%s466] sm:$0xff] %v918
          %921 = vst [vmem:[%s466 + $0x8] sm:$0xff] %v919
        $region96: #{tpu_custom_call.1} parent=47 // pred_fallthru
          _
        %s922 = sand.u32 %s238, 1
        %s923 = scalar_lea.sflag [#allocation9], %s922
        %s924 = sand.u32 %s238, 1
        %s925 = smul.addr %s924, 16
        %s926 = scalar_lea.vmem [#allocation15], %s925
        // Predicated region
        $region97: #{tpu_custom_call.1} parent=47 // pred_check
          %p927 = pneg %p248
        $region98: #{tpu_custom_call.1} parent=47 // pred_check_branch
          %929 = sbr.rel (%p927) target = $region100
        $region99: #{tpu_custom_call.1} parent=47 // pred_region
          %p930 = scmp.eq.s32.totalorder %s29, 2
          %s931 = scalar_select %p930, %s30, 0
          %s932 = smul.u32 2, %s931
          %934 = vsyncadd %s923, 0
          %s935 = smul.addr %s932, 8
          %s936 = scalar_lea.hbm %s7, %s935
          %s937 = sshll.u32 %s926, 4
          %s938 = int_to_ptr.vmem [resolvable:$true] %s937
          %s939 = sshll.u32 %s936, 4
          %s940 = int_to_ptr.hbm [resolvable:$true] %s939
          %945 = dma.vmem_to_hbm [thread:$0]  %s938, 256, %s940, %s923, 128, 128, 8
        $region100: #{tpu_custom_call.1} parent=47 // pred_fallthru
          _
      $region48: #{tpu_custom_call.1} parent=5 // pred_fallthru
        _
      %p946 = scmp.le.s32.totalorder 2, %s20
      // Predicated region
      $region101: #{tpu_custom_call.1} parent=5 // pred_check
        %p947 = pneg %p946
      $region102: #{tpu_custom_call.1} parent=5 // pred_check_branch
        %949 = sbr.rel (%p947) target = $region104
      $region103: #{tpu_custom_call.1} parent=5 // pred_region
        %s950 = ssub.s32 %s20, 2
        // Predicated region
        $region105: #{tpu_custom_call.1} parent=103 // pred_check
          %p951 = pneg %p254
        $region106: #{tpu_custom_call.1} parent=103 // pred_check_branch
          %953 = sbr.rel (%p951) target = $region108
        $region107: #{tpu_custom_call.1} parent=103 // pred_region
          %s954 = sand.u32 %s239, 1
          %s955 = scalar_lea.sflag [#allocation9], %s954
          %s956 = sand.u32 %s239, 1
          %s957 = smul.addr %s956, 16
          %s958 = scalar_lea.vmem [#allocation15], %s957
          %960 = dma.done %s955, 256
        $region108: #{tpu_custom_call.1} parent=103 // pred_fallthru
          _
      $region104: #{tpu_custom_call.1} parent=5 // pred_fallthru
        _
    $region6: #{tpu_custom_call.1} parent=1 // loop_footer
      %s24 = sadd.s32 1, %s20
    $region7: #{tpu_custom_call.1} parent=1 // loop_footer_branch
      %19 = sbr.rel target = $region3
    $region8: #{tpu_custom_call.1} parent=1 // loop_exit
      _
    %961 = vsyncpa [#allocation8], 1
    %s962 = scalar_lea.sflag [#allocation8], 1
    %963 = vsyncpa %s962, 1
    %964 = vsyncpa [#allocation11], 1
    %965 = vsyncpa [#allocation9], 1
    %s966 = scalar_lea.sflag [#allocation9], 1
    %967 = vsyncpa %s966, 1

</llo_original>
